<compile_context>
chip_gen: v7x
topology: tpu7x:2x2x1
jax: 0.10.0
libtpu: 0.0.40
codegen_flags: <defaults>
</compile_context>

<pallas_src>
import math

import jax
import jax.numpy as jnp
import numpy as np
from jax import lax
from jax.experimental import pallas as pl
from jax.experimental.pallas import tpu as pltpu

# ----------------------------- config ---------------------------------------
B = 2            # batch
T = 8            # encoder time steps
H = 32           # hidden_size
E = 32           # embedding_dim (== hidden_size in this config)
V = 128          # nl_vocab_size (output vocab)
VOCAB_IN = 64    # decoder input vocab (embedding rows)
EPS = 1e-12      # config.eps
INIT_STD = 0.01  # config.init_normal_std
INIT_MAG = 0.1   # config.init_uniform_mag

assert (B & (B - 1)) == 0, "kernel uses bitwise-and for (row mod B)"

# -------- row offsets inside the packed [W_ROWS, H] weight slab (8-aligned slices) --
R_GIE = 0                       # precomputed  emb @ W_ih(emb) + b_ih, gates r,z,n  3 x [VOCAB_IN, H]
R_AW1 = R_GIE + 3 * VOCAB_IN    # attn W acting on hidden   [H, H]
R_AW2 = R_AW1 + H               # attn W acting on encoder  [H, H]
R_WIC = R_AW2 + H               # GRU W_ih (ctx half), gates r,z,n   3 x [H, H]
R_WHH = R_WIC + 3 * H           # GRU W_hh,            gates r,z,n   3 x [H, H]
R_B = R_WHH + 3 * H             # bias rows: attn_b, v, b_hh_{r,z,n}, pad
W_ROWS = R_B + 8


# ----------------------------- kernel ---------------------------------------
def decoder_kernel(idx_ref,            # SMEM  (B,) int32   (scalar prefetch)
                   hid_ref,            # VMEM  [B, H]
                   enc_ref,            # VMEM  [T*B, H]     t-major: row r=(t,b), b = r & (B-1)
                   w_ref,              # VMEM  [W_ROWS, H]  packed weight slab
                   ow_ref,             # VMEM  [2H+1, V]    packed output projection
                   dist_ref,           # out   [B, V]
                   hnew_ref):          # out   [B, H]
    f32 = jnp.float32
    hidden = hid_ref[...]              # [B, H]
    enc = enc_ref[...]                 # [T*B, H]

    def w(r0, nrows):                  # static, sublane-aligned view of the slab
        return w_ref[r0:r0 + nrows, :]

    # ---- selector matrices (iota + VPU only; replace the old wrapper transpose) ----
    ri = lax.broadcasted_iota(jnp.int32, (T * B, B), 0)
    bi = lax.broadcasted_iota(jnp.int32, (T * B, B), 1)
    sel = (jnp.bitwise_and(ri, B - 1) == bi).astype(f32)          # [T*B, B]: 1 iff r%B==b
    bb = lax.broadcasted_iota(jnp.int32, (B, T * B), 0)
    rr = lax.broadcasted_iota(jnp.int32, (B, T * B), 1)
    selT = (jnp.bitwise_and(rr, B - 1) == bb).astype(f32)         # [B, T*B]

    # ---- attention: energy = relu(h@W1 + enc@W2 + b); score = energy . v ----------
    h_proj = (jnp.dot(hidden, w(R_AW1, H), preferred_element_type=f32)
              + w(R_B + 0, 1))                                    # [B, H] (attn bias folded)
    h_rep = jnp.dot(sel, h_proj, preferred_element_type=f32)      # [T*B, H] exact row select
    e_proj = jnp.dot(enc, w(R_AW2, H), preferred_element_type=f32)  # [T*B, H]
    energy = jnp.maximum(e_proj + h_rep, 0.0)
    v_row = w(R_B + 1, 1)                                         # [1, H]
    score = jnp.sum(energy * v_row, axis=-1, keepdims=True)       # [T*B, 1]
    m = jnp.max(score, axis=0, keepdims=True)                     # global max: safe shared shift
    ex = jnp.exp(score - m)                                       # [T*B, 1]
    denom = jnp.dot(selT, ex, preferred_element_type=f32)         # [B, 1]  per-batch sum over T
    wctx = jnp.dot(selT, ex * enc, preferred_element_type=f32)    # [B, H]  unnormalized context
    ctx = wctx * pl.reciprocal(denom, approx=True)                # [B, H]

    # ---- fused embedding lookup: one-hot (from SMEM ids) x precomputed gate tables --
    col = lax.broadcasted_iota(jnp.int32, (B, VOCAB_IN), 1)
    row = lax.broadcasted_iota(jnp.int32, (B, VOCAB_IN), 0)
    ids = jnp.full((B, VOCAB_IN), idx_ref[0], dtype=jnp.int32)
    for b in range(1, B):
        ids = jnp.where(row == b, idx_ref[b], ids)
    onehot = (col == ids).astype(f32)                             # [B, VOCAB_IN]

    # ---- single-step GRU (per-gate weights: no lane concat / lane slices) ----------
    def gates(g):
        gi = (jnp.dot(onehot, w(R_GIE + g * VOCAB_IN, VOCAB_IN),
                      preferred_element_type=f32)                 # emb@W_ie + b_ih (pre-folded)
              + jnp.dot(ctx, w(R_WIC + g * H, H), preferred_element_type=f32))
        gh = (jnp.dot(hidden, w(R_WHH + g * H, H), preferred_element_type=f32)
              + w(R_B + 2 + g, 1))
        return gi, gh

    gi_r, gh_r = gates(0)
    gi_z, gh_z = gates(1)
    gi_n, gh_n = gates(2)
    r = jax.nn.sigmoid(gi_r + gh_r)
    z = jax.nn.sigmoid(gi_z + gh_z)
    n = jnp.tanh(gi_n + r * gh_n)
    h_new = (1.0 - z) * n + z * hidden                            # [B, H]

    # ---- output projection (split halves) + exact softmax + log --------------------
    logits = (jnp.dot(h_new, ow_ref[0:H, :], preferred_element_type=f32)
              + jnp.dot(ctx, ow_ref[H:2 * H, :], preferred_element_type=f32)
              + ow_ref[2 * H:2 * H + 1, :])                       # [B, V]
    lm = jnp.max(logits, axis=-1, keepdims=True)
    le = jnp.exp(logits - lm)
    probs = le / jnp.sum(le, axis=-1, keepdims=True)              # exact reciprocal here

    dist_ref[...] = jnp.log(probs + EPS)                          # [B, V]
    hnew_ref[...] = h_new                                         # [B, H]


# ----------------------------- param packing (done once) ---------------------
def pack_params(p):
    """Pack the small parameter arrays into two sublane-stacked slabs.

    The embedding table is folded into the GRU at pack time:
    table_g = embedding @ W_ih[:E, gate g] + b_ih[gate g], so the in-kernel
    "embedding lookup" is a one-hot matmul against these tables.
    """
    hi = jax.lax.Precision.HIGHEST
    wih, whh = p['w_ih'], p['w_hh']
    w_ie, w_ic = wih[:E], wih[E:]
    gie = jnp.dot(p['embedding'], w_ie, precision=hi) + p['b_ih'][0]   # [VOCAB_IN, 3H]
    rows = [
        gie[:, 0:H], gie[:, H:2 * H], gie[:, 2 * H:3 * H],             # R_GIE r,z,n
        p['attn_w'][:H, :], p['attn_w'][H:, :],                        # R_AW1, R_AW2
        w_ic[:, 0:H], w_ic[:, H:2 * H], w_ic[:, 2 * H:],               # R_WIC r,z,n
        whh[:, 0:H], whh[:, H:2 * H], whh[:, 2 * H:],                  # R_WHH r,z,n
        p['attn_b'], p['v'],                                           # R_B+0, R_B+1
        p['b_hh'][:, 0:H], p['b_hh'][:, H:2 * H], p['b_hh'][:, 2 * H:],  # R_B+2..4
        jnp.zeros((3, H), jnp.float32),                                # pad to 8 rows
    ]
    w_slab = jnp.concatenate(rows, axis=0).astype(jnp.float32)
    assert w_slab.shape == (W_ROWS, H)
    out_slab = jnp.concatenate(
        [p['out_w'][:H, :], p['out_w'][H:, :], p['out_b']], axis=0).astype(jnp.float32)
    assert out_slab.shape == (2 * H + 1, V)
    return w_slab, out_slab


# ----------------------------- wrapper ---------------------------------------
_FLOPS = int(2 * (B * H * H + T * B * H * H + T * B * B * H + B * T * B + B * T * B * H
                  + 3 * B * VOCAB_IN * H + 6 * B * H * H + 2 * B * H * V))
_BYTES = int(4 * (B * H + T * B * H + W_ROWS * H + (2 * H + 1) * V + B * V + B * H))
_TRANS = int(2 * B * V + T * B + 3 * B * H + 2 * B)


def decoder_forward(inputs, last_hidden, code_outputs, packed):
    """inputs: [B] int32, last_hidden: [1,B,H], code_outputs: [T,B,H] (PyTorch layout)."""
    w_slab, out_slab = packed
    hidden = last_hidden.reshape(B, H)          # free reshape (no copy)
    enc_tb = code_outputs.reshape(T * B, H)     # free reshape, t-major -> NO transpose copy

    grid_spec = pltpu.PrefetchScalarGridSpec(
        num_scalar_prefetch=1,                  # token ids -> SMEM
        grid=(1,),
        in_specs=[
            pl.BlockSpec((B, H), lambda i, idx: (0, 0)),
            pl.BlockSpec((T * B, H), lambda i, idx: (0, 0)),
            pl.BlockSpec((W_ROWS, H), lambda i, idx: (0, 0)),
            pl.BlockSpec((2 * H + 1, V), lambda i, idx: (0, 0)),
        ],
        out_specs=(
            pl.BlockSpec((B, V), lambda i, idx: (0, 0)),
            pl.BlockSpec((B, H), lambda i, idx: (0, 0)),
        ),
    )

    final_dist, h_new = pl.pallas_call(
        decoder_kernel,
        out_shape=(jax.ShapeDtypeStruct((B, V), jnp.float32),
                   jax.ShapeDtypeStruct((B, H), jnp.float32)),
        grid_spec=grid_spec,
        # arg indices count the scalar-prefetch operand: 0=ids, 1=hidden, ...
        input_output_aliases={1: 1},            # hidden buffer reused for h_new
        compiler_params=pltpu.CompilerParams(
            dimension_semantics=("arbitrary",)),
        cost_estimate=pl.CostEstimate(flops=_FLOPS, transcendentals=_TRANS,
                                      bytes_accessed=_BYTES),
    )(inputs.astype(jnp.int32), hidden, enc_tb, w_slab, out_slab)

    return final_dist, h_new.reshape(1, B, H)                          # [B, V], [1, B, H]


# ----------------------------- pure-JAX reference ----------------------------
def decoder_reference(inputs, last_hidden, code_outputs, p):
    hi = jax.lax.Precision.HIGHEST
    emb = jnp.take(p['embedding'], inputs, axis=0)
    hidden = last_hidden[0]
    enc = jnp.transpose(code_outputs, (1, 0, 2))
    h_rep = jnp.broadcast_to(hidden[:, None, :], enc.shape)
    cat = jnp.concatenate([h_rep, enc], axis=-1)
    energy = jax.nn.relu(jnp.einsum('btk,kh->bth', cat, p['attn_w'], precision=hi)
                         + p['attn_b'][0])
    score = jnp.einsum('bth,h->bt', energy, p['v'][0], precision=hi)
    attn = jax.nn.softmax(score, axis=-1)
    ctx = jnp.einsum('bt,bth->bh', attn, enc, precision=hi)
    x = jnp.concatenate([emb, ctx], axis=-1)
    gi = jnp.dot(x, p['w_ih'], precision=hi) + p['b_ih'][0]
    gh = jnp.dot(hidden, p['w_hh'], precision=hi) + p['b_hh'][0]
    r = jax.nn.sigmoid(gi[:, :H] + gh[:, :H])
    z = jax.nn.sigmoid(gi[:, H:2 * H] + gh[:, H:2 * H])
    n = jnp.tanh(gi[:, 2 * H:] + r * gh[:, 2 * H:])
    h_new = (1.0 - z) * n + z * hidden
    o = jnp.concatenate([h_new, ctx], axis=-1)
    logits = jnp.dot(o, p['out_w'], precision=hi) + p['out_b'][0]
    vocab_dist = jax.nn.softmax(logits, axis=-1)
    return jnp.log(vocab_dist + EPS), h_new[None]


# ----------------------------- params ----------------------------------------
def init_params(key):
    ks = jax.random.split(key, 8)
    # GRU biases: zeros with [n//4 : n//2] filled with 1.0 (init_rnn_wt)
    n3h = 3 * H
    gru_bias = jnp.zeros((n3h,), jnp.float32).at[n3h // 4:n3h // 2].set(1.0)
    return {
        'embedding': INIT_STD * jax.random.normal(ks[0], (VOCAB_IN, E), jnp.float32),
        'attn_w': (1.0 / math.sqrt(2 * H)) * jax.random.normal(ks[1], (2 * H, H), jnp.float32),
        'attn_b': (1.0 / math.sqrt(2 * H)) * jax.random.normal(ks[2], (1, H), jnp.float32),
        'v': (1.0 / math.sqrt(H)) * jax.random.normal(ks[3], (1, H), jnp.float32),
        'w_ih': jax.random.uniform(ks[4], (E + H, 3 * H), jnp.float32, -INIT_MAG, INIT_MAG),
        'b_ih': gru_bias[None, :],
        'w_hh': jax.random.uniform(ks[5], (H, 3 * H), jnp.float32, -INIT_MAG, INIT_MAG),
        'b_hh': gru_bias[None, :],
        'out_w': INIT_STD * jax.random.normal(ks[6], (2 * H, V), jnp.float32),
        'out_b': INIT_STD * jax.random.normal(ks[7], (1, V), jnp.float32),
    }


# ----------------------------- main -------------------------------------------
if __name__ == "__main__":
    key = jax.random.PRNGKey(0)
    kp, k1, k2, k3 = jax.random.split(key, 4)
    params = init_params(kp)
    packed = pack_params(params)          # pack weight slabs once (not per step)

    inputs = jax.random.randint(k1, (B,), 0, VOCAB_IN, dtype=jnp.int32)       # [B]
    last_hidden = jax.random.normal(k2, (1, B, H), jnp.float32)               # [1, B, H]
    code_outputs = jax.random.normal(k3, (T, B, H), jnp.float32)              # [T, B, H]

    final_dist, hidden = decoder_forward(inputs, last_hidden, code_outputs, packed)
    jax.block_until_ready((final_dist, hidden))

    ref_dist, ref_hidden = decoder_reference(inputs, last_hidden, code_outputs, params)
    np.testing.assert_allclose(np.asarray(final_dist), np.asarray(ref_dist),
                               rtol=2e-3, atol=2e-3)
    np.testing.assert_allclose(np.asarray(hidden), np.asarray(ref_hidden),
                               rtol=2e-3, atol=2e-3)

    assert final_dist.shape == (B, V) and hidden.shape == (1, B, H)
    print("KERNEL_OK")
</pallas_src>

<mosaic_0001>
module attributes {stable_mosaic.version = 11 : i64} {
  func.func @decoder_kernel(%arg0: i32, %arg1: memref<2xi32, #tpu.memory_space<smem>>, %arg2: memref<2x32xf32, #tpu.memory_space<vmem>>, %arg3: memref<16x32xf32, #tpu.memory_space<vmem>>, %arg4: memref<456x32xf32, #tpu.memory_space<vmem>>, %arg5: memref<65x128xf32, #tpu.memory_space<vmem>>, %arg6: memref<2x128xf32, #tpu.memory_space<vmem>>, %arg7: memref<2x32xf32, #tpu.memory_space<vmem>>) attributes {dimension_semantics = [#tpu.dimension_semantics<arbitrary>], iteration_bounds = array<i64: 1>, scalar_prefetch = 1 : i64, scratch_operands = 0 : i64, tpu.core_type = #tpu.core_type<tc>, window_params = [{pipeline_mode = #tpu.pipeline_mode<synchronous>, transform_indices = @transform_0, window_bounds = array<i64: 2, 32>}, {pipeline_mode = #tpu.pipeline_mode<synchronous>, transform_indices = @transform_1, window_bounds = array<i64: 16, 32>}, {pipeline_mode = #tpu.pipeline_mode<synchronous>, transform_indices = @transform_2, window_bounds = array<i64: 456, 32>}, {pipeline_mode = #tpu.pipeline_mode<synchronous>, transform_indices = @transform_3, window_bounds = array<i64: 65, 128>}, {pipeline_mode = #tpu.pipeline_mode<synchronous>, transform_indices = @transform_4, window_bounds = array<i64: 2, 128>}, {pipeline_mode = #tpu.pipeline_mode<synchronous>, transform_indices = @transform_5, window_bounds = array<i64: 2, 32>}]} {
    %c0 = arith.constant 0 : index
    %c0_0 = arith.constant 0 : index
    %0 = vector.load %arg2[%c0, %c0_0] : memref<2x32xf32, #tpu.memory_space<vmem>>, vector<2x32xf32>
    %c0_1 = arith.constant 0 : index
    %c0_2 = arith.constant 0 : index
    %1 = vector.load %arg3[%c0_1, %c0_2] : memref<16x32xf32, #tpu.memory_space<vmem>>, vector<16x32xf32>
    %2 = tpu.iota {dimensions = array<i32: 0>} : vector<16x2xi32>
    %3 = tpu.iota {dimensions = array<i32: 1>} : vector<16x2xi32>
    %c1_i32 = arith.constant 1 : i32
    %4 = vector.broadcast %c1_i32 : i32 to vector<16x2xi32>
    %5 = arith.andi %2, %4 : vector<16x2xi32>
    %6 = arith.cmpi eq, %5, %3 : vector<16x2xi32>
    %7 = arith.extui %6 : vector<16x2xi1> to vector<16x2xi32>
    %8 = arith.sitofp %7 : vector<16x2xi32> to vector<16x2xf32>
    %9 = tpu.iota {dimensions = array<i32: 0>} : vector<2x16xi32>
    %10 = tpu.iota {dimensions = array<i32: 1>} : vector<2x16xi32>
    %c1_i32_3 = arith.constant 1 : i32
    %11 = vector.broadcast %c1_i32_3 : i32 to vector<2x16xi32>
    %12 = arith.andi %10, %11 : vector<2x16xi32>
    %13 = arith.cmpi eq, %12, %9 : vector<2x16xi32>
    %14 = arith.extui %13 : vector<2x16xi1> to vector<2x16xi32>
    %15 = arith.sitofp %14 : vector<2x16xi32> to vector<2x16xf32>
    %c192 = arith.constant 192 : index
    %c0_4 = arith.constant 0 : index
    %16 = vector.load %arg4[%c192, %c0_4] : memref<456x32xf32, #tpu.memory_space<vmem>>, vector<32x32xf32>
    %cst = arith.constant dense<0.000000e+00> : vector<2x32xf32>
    %17 = tpu.matmul %0, %16, %cst {dimension_numbers = #tpu.dot_dimension_numbers<[1], [0], [0], [1], [0, 0, 1, 1], [], []>} : vector<2x32xf32>, vector<32x32xf32>, vector<2x32xf32> -> vector<2x32xf32>
    %c448 = arith.constant 448 : index
    %c0_5 = arith.constant 0 : index
    %18 = vector.load %arg4[%c448, %c0_5] : memref<456x32xf32, #tpu.memory_space<vmem>>, vector<1x32xf32>
    %19 = vector.broadcast %18 : vector<1x32xf32> to vector<2x32xf32>
    %20 = arith.addf %17, %19 : vector<2x32xf32>
    %cst_6 = arith.constant dense<0.000000e+00> : vector<16x32xf32>
    %21 = tpu.matmul %8, %20, %cst_6 {dimension_numbers = #tpu.dot_dimension_numbers<[1], [0], [0], [1], [0, 0, 1, 1], [], []>} : vector<16x2xf32>, vector<2x32xf32>, vector<16x32xf32> -> vector<16x32xf32>
    %c224 = arith.constant 224 : index
    %c0_7 = arith.constant 0 : index
    %22 = vector.load %arg4[%c224, %c0_7] : memref<456x32xf32, #tpu.memory_space<vmem>>, vector<32x32xf32>
    %cst_8 = arith.constant dense<0.000000e+00> : vector<16x32xf32>
    %23 = tpu.matmul %1, %22, %cst_8 {dimension_numbers = #tpu.dot_dimension_numbers<[1], [0], [0], [1], [0, 0, 1, 1], [], []>} : vector<16x32xf32>, vector<32x32xf32>, vector<16x32xf32> -> vector<16x32xf32>
    %24 = arith.addf %23, %21 : vector<16x32xf32>
    %cst_9 = arith.constant 0.000000e+00 : f32
    %25 = vector.broadcast %cst_9 : f32 to vector<16x32xf32>
    %26 = arith.maximumf %24, %25 : vector<16x32xf32>
    %c449 = arith.constant 449 : index
    %c0_10 = arith.constant 0 : index
    %27 = vector.load %arg4[%c449, %c0_10] : memref<456x32xf32, #tpu.memory_space<vmem>>, vector<1x32xf32>
    %28 = vector.broadcast %27 : vector<1x32xf32> to vector<16x32xf32>
    %29 = arith.mulf %26, %28 : vector<16x32xf32>
    %cst_11 = arith.constant dense<0.000000e+00> : vector<16xf32>
    %30 = vector.multi_reduction <add>, %29, %cst_11 [1] : vector<16x32xf32> to vector<16xf32>
    %31 = vector.shape_cast %30 : vector<16xf32> to vector<16x1xf32>
    %cst_12 = arith.constant dense<0xFF800000> : vector<1xf32>
    %32 = vector.multi_reduction <maximumf>, %31, %cst_12 [0] : vector<16x1xf32> to vector<1xf32>
    %33 = vector.shape_cast %32 : vector<1xf32> to vector<1x1xf32>
    %34 = vector.broadcast %33 : vector<1x1xf32> to vector<16x1xf32>
    %35 = arith.subf %31, %34 : vector<16x1xf32>
    %36 = math.exp %35 : vector<16x1xf32>
    %cst_13 = arith.constant dense<0.000000e+00> : vector<2x1xf32>
    %37 = tpu.matmul %15, %36, %cst_13 {dimension_numbers = #tpu.dot_dimension_numbers<[1], [0], [0], [1], [0, 0, 1, 1], [], []>} : vector<2x16xf32>, vector<16x1xf32>, vector<2x1xf32> -> vector<2x1xf32>
    %38 = vector.broadcast %36 : vector<16x1xf32> to vector<16x32xf32>
    %39 = arith.mulf %38, %1 : vector<16x32xf32>
    %cst_14 = arith.constant dense<0.000000e+00> : vector<2x32xf32>
    %40 = tpu.matmul %15, %39, %cst_14 {dimension_numbers = #tpu.dot_dimension_numbers<[1], [0], [0], [1], [0, 0, 1, 1], [], []>} : vector<2x16xf32>, vector<16x32xf32>, vector<2x32xf32> -> vector<2x32xf32>
    %41 = tpu.reciprocal %37 {approx = true} : vector<2x1xf32> -> vector<2x1xf32>
    %42 = vector.broadcast %41 : vector<2x1xf32> to vector<2x32xf32>
    %43 = arith.mulf %40, %42 : vector<2x32xf32>
    %44 = tpu.iota {dimensions = array<i32: 1>} : vector<2x64xi32>
    %45 = tpu.iota {dimensions = array<i32: 0>} : vector<2x64xi32>
    %c0_15 = arith.constant 0 : index
    %46 = memref.load %arg1[%c0_15] : memref<2xi32, #tpu.memory_space<smem>>
    %47 = vector.broadcast %46 : i32 to vector<2x64xi32>
    %c1_i32_16 = arith.constant 1 : i32
    %48 = vector.broadcast %c1_i32_16 : i32 to vector<2x64xi32>
    %49 = arith.cmpi eq, %45, %48 : vector<2x64xi32>
    %c1 = arith.constant 1 : index
    %50 = memref.load %arg1[%c1] : memref<2xi32, #tpu.memory_space<smem>>
    %51 = vector.broadcast %50 : i32 to vector<2x64xi32>
    %52 = arith.select %49, %51, %47 : vector<2x64xi1>, vector<2x64xi32>
    %53 = arith.cmpi eq, %44, %52 : vector<2x64xi32>
    %54 = arith.extui %53 : vector<2x64xi1> to vector<2x64xi32>
    %55 = arith.sitofp %54 : vector<2x64xi32> to vector<2x64xf32>
    %c0_17 = arith.constant 0 : index
    %c0_18 = arith.constant 0 : index
    %56 = vector.load %arg4[%c0_17, %c0_18] : memref<456x32xf32, #tpu.memory_space<vmem>>, vector<64x32xf32>
    %cst_19 = arith.constant dense<0.000000e+00> : vector<2x32xf32>
    %57 = tpu.matmul %55, %56, %cst_19 {dimension_numbers = #tpu.dot_dimension_numbers<[1], [0], [0], [1], [0, 0, 1, 1], [], []>} : vector<2x64xf32>, vector<64x32xf32>, vector<2x32xf32> -> vector<2x32xf32>
    %c256 = arith.constant 256 : index
    %c0_20 = arith.constant 0 : index
    %58 = vector.load %arg4[%c256, %c0_20] : memref<456x32xf32, #tpu.memory_space<vmem>>, vector<32x32xf32>
    %cst_21 = arith.constant dense<0.000000e+00> : vector<2x32xf32>
    %59 = tpu.matmul %43, %58, %cst_21 {dimension_numbers = #tpu.dot_dimension_numbers<[1], [0], [0], [1], [0, 0, 1, 1], [], []>} : vector<2x32xf32>, vector<32x32xf32>, vector<2x32xf32> -> vector<2x32xf32>
    %60 = arith.addf %57, %59 : vector<2x32xf32>
    %c352 = arith.constant 352 : index
    %c0_22 = arith.constant 0 : index
    %61 = vector.load %arg4[%c352, %c0_22] : memref<456x32xf32, #tpu.memory_space<vmem>>, vector<32x32xf32>
    %cst_23 = arith.constant dense<0.000000e+00> : vector<2x32xf32>
    %62 = tpu.matmul %0, %61, %cst_23 {dimension_numbers = #tpu.dot_dimension_numbers<[1], [0], [0], [1], [0, 0, 1, 1], [], []>} : vector<2x32xf32>, vector<32x32xf32>, vector<2x32xf32> -> vector<2x32xf32>
    %c450 = arith.constant 450 : index
    %c0_24 = arith.constant 0 : index
    %63 = vector.load %arg4[%c450, %c0_24] : memref<456x32xf32, #tpu.memory_space<vmem>>, vector<1x32xf32>
    %64 = vector.broadcast %63 : vector<1x32xf32> to vector<2x32xf32>
    %65 = arith.addf %62, %64 : vector<2x32xf32>
    %c64 = arith.constant 64 : index
    %c0_25 = arith.constant 0 : index
    %66 = vector.load %arg4[%c64, %c0_25] : memref<456x32xf32, #tpu.memory_space<vmem>>, vector<64x32xf32>
    %cst_26 = arith.constant dense<0.000000e+00> : vector<2x32xf32>
    %67 = tpu.matmul %55, %66, %cst_26 {dimension_numbers = #tpu.dot_dimension_numbers<[1], [0], [0], [1], [0, 0, 1, 1], [], []>} : vector<2x64xf32>, vector<64x32xf32>, vector<2x32xf32> -> vector<2x32xf32>
    %c288 = arith.constant 288 : index
    %c0_27 = arith.constant 0 : index
    %68 = vector.load %arg4[%c288, %c0_27] : memref<456x32xf32, #tpu.memory_space<vmem>>, vector<32x32xf32>
    %cst_28 = arith.constant dense<0.000000e+00> : vector<2x32xf32>
    %69 = tpu.matmul %43, %68, %cst_28 {dimension_numbers = #tpu.dot_dimension_numbers<[1], [0], [0], [1], [0, 0, 1, 1], [], []>} : vector<2x32xf32>, vector<32x32xf32>, vector<2x32xf32> -> vector<2x32xf32>
    %70 = arith.addf %67, %69 : vector<2x32xf32>
    %c384 = arith.constant 384 : index
    %c0_29 = arith.constant 0 : index
    %71 = vector.load %arg4[%c384, %c0_29] : memref<456x32xf32, #tpu.memory_space<vmem>>, vector<32x32xf32>
    %cst_30 = arith.constant dense<0.000000e+00> : vector<2x32xf32>
    %72 = tpu.matmul %0, %71, %cst_30 {dimension_numbers = #tpu.dot_dimension_numbers<[1], [0], [0], [1], [0, 0, 1, 1], [], []>} : vector<2x32xf32>, vector<32x32xf32>, vector<2x32xf32> -> vector<2x32xf32>
    %c451 = arith.constant 451 : index
    %c0_31 = arith.constant 0 : index
    %73 = vector.load %arg4[%c451, %c0_31] : memref<456x32xf32, #tpu.memory_space<vmem>>, vector<1x32xf32>
    %74 = vector.broadcast %73 : vector<1x32xf32> to vector<2x32xf32>
    %75 = arith.addf %72, %74 : vector<2x32xf32>
    %c128 = arith.constant 128 : index
    %c0_32 = arith.constant 0 : index
    %76 = vector.load %arg4[%c128, %c0_32] : memref<456x32xf32, #tpu.memory_space<vmem>>, vector<64x32xf32>
    %cst_33 = arith.constant dense<0.000000e+00> : vector<2x32xf32>
    %77 = tpu.matmul %55, %76, %cst_33 {dimension_numbers = #tpu.dot_dimension_numbers<[1], [0], [0], [1], [0, 0, 1, 1], [], []>} : vector<2x64xf32>, vector<64x32xf32>, vector<2x32xf32> -> vector<2x32xf32>
    %c320 = arith.constant 320 : index
    %c0_34 = arith.constant 0 : index
    %78 = vector.load %arg4[%c320, %c0_34] : memref<456x32xf32, #tpu.memory_space<vmem>>, vector<32x32xf32>
    %cst_35 = arith.constant dense<0.000000e+00> : vector<2x32xf32>
    %79 = tpu.matmul %43, %78, %cst_35 {dimension_numbers = #tpu.dot_dimension_numbers<[1], [0], [0], [1], [0, 0, 1, 1], [], []>} : vector<2x32xf32>, vector<32x32xf32>, vector<2x32xf32> -> vector<2x32xf32>
    %80 = arith.addf %77, %79 : vector<2x32xf32>
    %c416 = arith.constant 416 : index
    %c0_36 = arith.constant 0 : index
    %81 = vector.load %arg4[%c416, %c0_36] : memref<456x32xf32, #tpu.memory_space<vmem>>, vector<32x32xf32>
    %cst_37 = arith.constant dense<0.000000e+00> : vector<2x32xf32>
    %82 = tpu.matmul %0, %81, %cst_37 {dimension_numbers = #tpu.dot_dimension_numbers<[1], [0], [0], [1], [0, 0, 1, 1], [], []>} : vector<2x32xf32>, vector<32x32xf32>, vector<2x32xf32> -> vector<2x32xf32>
    %c452 = arith.constant 452 : index
    %c0_38 = arith.constant 0 : index
    %83 = vector.load %arg4[%c452, %c0_38] : memref<456x32xf32, #tpu.memory_space<vmem>>, vector<1x32xf32>
    %84 = vector.broadcast %83 : vector<1x32xf32> to vector<2x32xf32>
    %85 = arith.addf %82, %84 : vector<2x32xf32>
    %86 = arith.addf %60, %65 : vector<2x32xf32>
    %87 = arith.negf %86 : vector<2x32xf32>
    %88 = math.exp %87 : vector<2x32xf32>
    %cst_39 = arith.constant 1.000000e+00 : f32
    %89 = vector.broadcast %cst_39 : f32 to vector<2x32xf32>
    %90 = arith.addf %89, %88 : vector<2x32xf32>
    %91 = arith.divf %89, %90 : vector<2x32xf32>
    %92 = arith.addf %70, %75 : vector<2x32xf32>
    %93 = arith.negf %92 : vector<2x32xf32>
    %94 = math.exp %93 : vector<2x32xf32>
    %cst_40 = arith.constant 1.000000e+00 : f32
    %95 = vector.broadcast %cst_40 : f32 to vector<2x32xf32>
    %96 = arith.addf %95, %94 : vector<2x32xf32>
    %97 = arith.divf %95, %96 : vector<2x32xf32>
    %98 = arith.mulf %91, %85 : vector<2x32xf32>
    %99 = arith.addf %80, %98 : vector<2x32xf32>
    %100 = math.tanh %99 : vector<2x32xf32>
    %cst_41 = arith.constant 1.000000e+00 : f32
    %101 = vector.broadcast %cst_41 : f32 to vector<2x32xf32>
    %102 = arith.subf %101, %97 : vector<2x32xf32>
    %103 = arith.mulf %102, %100 : vector<2x32xf32>
    %104 = arith.mulf %97, %0 : vector<2x32xf32>
    %105 = arith.addf %103, %104 : vector<2x32xf32>
    %c0_42 = arith.constant 0 : index
    %c0_43 = arith.constant 0 : index
    %106 = vector.load %arg5[%c0_42, %c0_43] : memref<65x128xf32, #tpu.memory_space<vmem>>, vector<32x128xf32>
    %cst_44 = arith.constant dense<0.000000e+00> : vector<2x128xf32>
    %107 = tpu.matmul %105, %106, %cst_44 {dimension_numbers = #tpu.dot_dimension_numbers<[1], [0], [0], [1], [0, 0, 1, 1], [], []>} : vector<2x32xf32>, vector<32x128xf32>, vector<2x128xf32> -> vector<2x128xf32>
    %c32 = arith.constant 32 : index
    %c0_45 = arith.constant 0 : index
    %108 = vector.load %arg5[%c32, %c0_45] : memref<65x128xf32, #tpu.memory_space<vmem>>, vector<32x128xf32>
    %cst_46 = arith.constant dense<0.000000e+00> : vector<2x128xf32>
    %109 = tpu.matmul %43, %108, %cst_46 {dimension_numbers = #tpu.dot_dimension_numbers<[1], [0], [0], [1], [0, 0, 1, 1], [], []>} : vector<2x32xf32>, vector<32x128xf32>, vector<2x128xf32> -> vector<2x128xf32>
    %110 = arith.addf %107, %109 : vector<2x128xf32>
    %c64_47 = arith.constant 64 : index
    %c0_48 = arith.constant 0 : index
    %111 = vector.load %arg5[%c64_47, %c0_48] : memref<65x128xf32, #tpu.memory_space<vmem>>, vector<1x128xf32>
    %112 = vector.broadcast %111 : vector<1x128xf32> to vector<2x128xf32>
    %113 = arith.addf %110, %112 : vector<2x128xf32>
    %cst_49 = arith.constant dense<0xFF800000> : vector<2xf32>
    %114 = vector.multi_reduction <maximumf>, %113, %cst_49 [1] : vector<2x128xf32> to vector<2xf32>
    %115 = vector.shape_cast %114 : vector<2xf32> to vector<2x1xf32>
    %116 = vector.broadcast %115 : vector<2x1xf32> to vector<2x128xf32>
    %117 = arith.subf %113, %116 : vector<2x128xf32>
    %118 = math.exp %117 : vector<2x128xf32>
    %cst_50 = arith.constant dense<0.000000e+00> : vector<2xf32>
    %119 = vector.multi_reduction <add>, %118, %cst_50 [1] : vector<2x128xf32> to vector<2xf32>
    %120 = vector.shape_cast %119 : vector<2xf32> to vector<2x1xf32>
    %121 = vector.broadcast %120 : vector<2x1xf32> to vector<2x128xf32>
    %122 = arith.divf %118, %121 : vector<2x128xf32>
    %cst_51 = arith.constant 9.99999996E-13 : f32
    %123 = vector.broadcast %cst_51 : f32 to vector<2x128xf32>
    %124 = arith.addf %122, %123 : vector<2x128xf32>
    %125 = math.log %124 : vector<2x128xf32>
    %c0_52 = arith.constant 0 : index
    %c0_53 = arith.constant 0 : index
    %126 = vector.load %arg6[%c0_52, %c0_53] : memref<2x128xf32, #tpu.memory_space<vmem>>, vector<2x128xf32>
    tpu.vector_store %arg6[%c0_52, %c0_53], %125 {strides = array<i32>} : memref<2x128xf32, #tpu.memory_space<vmem>>, vector<2x128xf32>,
    %c0_54 = arith.constant 0 : index
    %c0_55 = arith.constant 0 : index
    %127 = vector.load %arg7[%c0_54, %c0_55] : memref<2x32xf32, #tpu.memory_space<vmem>>, vector<2x32xf32>
    tpu.vector_store %arg7[%c0_54, %c0_55], %105 {strides = array<i32>} : memref<2x32xf32, #tpu.memory_space<vmem>>, vector<2x32xf32>,
    return
  }
  func.func @transform_0(%arg0: i32, %arg1: memref<2xi32, #tpu.memory_space<smem>>) -> (i32, i32) {
    %c0_i32 = arith.constant 0 : i32
    %c0_i32_0 = arith.constant 0 : i32
    %c0_i32_1 = arith.constant 0 : i32
    return %c0_i32, %c0_i32_0 : i32, i32
  }
  func.func @transform_1(%arg0: i32, %arg1: memref<2xi32, #tpu.memory_space<smem>>) -> (i32, i32) {
    %c0_i32 = arith.constant 0 : i32
    %c0_i32_0 = arith.constant 0 : i32
    %c0_i32_1 = arith.constant 0 : i32
    return %c0_i32, %c0_i32_0 : i32, i32
  }
  func.func @transform_2(%arg0: i32, %arg1: memref<2xi32, #tpu.memory_space<smem>>) -> (i32, i32) {
    %c0_i32 = arith.constant 0 : i32
    %c0_i32_0 = arith.constant 0 : i32
    %c0_i32_1 = arith.constant 0 : i32
    return %c0_i32, %c0_i32_0 : i32, i32
  }
  func.func @transform_3(%arg0: i32, %arg1: memref<2xi32, #tpu.memory_space<smem>>) -> (i32, i32) {
    %c0_i32 = arith.constant 0 : i32
    %c0_i32_0 = arith.constant 0 : i32
    %c0_i32_1 = arith.constant 0 : i32
    return %c0_i32, %c0_i32_0 : i32, i32
  }
  func.func @transform_4(%arg0: i32, %arg1: memref<2xi32, #tpu.memory_space<smem>>) -> (i32, i32) {
    %c0_i32 = arith.constant 0 : i32
    %c0_i32_0 = arith.constant 0 : i32
    %c0_i32_1 = arith.constant 0 : i32
    return %c0_i32, %c0_i32_0 : i32, i32
  }
  func.func @transform_5(%arg0: i32, %arg1: memref<2xi32, #tpu.memory_space<smem>>) -> (i32, i32) {
    %c0_i32 = arith.constant 0 : i32
    %c0_i32_0 = arith.constant 0 : i32
    %c0_i32_1 = arith.constant 0 : i32
    return %c0_i32, %c0_i32_0 : i32, i32
  }
}

</mosaic_0001>

<llo_original>
// kernel: tpu_custom_call.1
$region0: #{tpu_custom_call.1}
  #allocation0 [shape = 'u32[]', space=smem, size = 0x4, offset = 0x4, fixed_abs, tag = 'smem constant byte address 0x4 - core index']
  #allocation1 [shape = 'u32[144,128]{1,0:T(1,128)}', space=vmem, size = 0x12000, scoped, tag = 'internal scratch']
  #allocation2 [shape = 's32[1]{0}', space=sflag, size = 0x4, scoped, tag = 'scoped memory for tpu_custom_call.1']
  #allocation3 [shape = 'u8[512]{0}', space=smem, size = 0x200, scoped, tag = 'prefetched SMEM operand 0']
  %s0 = inlined_call_operand.vmem [shape: s32[2], index: 0, kind: input, shape index: {}]
  %s1 = inlined_call_operand.hbm [shape: f32[2,32], index: 1, kind: input, shape index: {}, may-alias: {1,6}]
  %s2 = inlined_call_operand.vmem [shape: f32[16,32], index: 2, kind: input, shape index: {}]
  %s3 = inlined_call_operand.vmem [shape: f32[456,32], index: 3, kind: input, shape index: {}]
  %s4 = inlined_call_operand.vmem [shape: f32[65,128], index: 4, kind: input, shape index: {}]
  %s5 = inlined_call_operand.hbm [shape: f32[2,128], index: 5, kind: output, shape index: {0}]
  %s6 = inlined_call_operand.hbm [shape: f32[2,32], index: 6, kind: output, shape index: {1}, may-alias: {1,6}]
  %7 = xla_tuple %s5, %s6
  %s8 = sld [smem:[#allocation0]]
  $region38: #{tpu_custom_call.1} parent=0
    _
  %s10 = ssub.s32 1, %s8
  %s11 = scalar_select 0, %s10, %s8
  %s12 = sshll.u32 %s0, 4
  %s13 = int_to_ptr.vmem [resolvable:$true] %s12
  %15 = dma.vmem_to_smem %s13, 16, [#allocation3], [#allocation2]
  %16 = dma.done [#allocation2], 16
  %17 = sfence
  $region1: #{tpu_custom_call.1} parent=0
    #allocation4 [shape = 'u8[1024]{0}', space=vmem, size = 0x400, scoped, tag = 'input window, operand 1, single buffered']
    #allocation5 [shape = 's32[1]{0}', space=sflag, size = 0x4, scoped, tag = 'scoped memory for tpu_custom_call.1']
    #allocation6 [shape = 's32[1]{0}', space=sflag, size = 0x4, scoped, tag = 'scoped memory for tpu_custom_call.1']
    #allocation7 [shape = 'u8[1024]{0}', space=vmem, size = 0x400, scoped, tag = 'output window, operand 0, single buffered']
    #allocation8 [shape = 'u8[1024]{0}', space=vmem, size = 0x400, scoped, tag = 'output window, operand 1, single buffered']
    #allocation9 [shape = 's32[1]{0}', space=sflag, size = 0x4, scoped, tag = 'scoped memory for tpu_custom_call.1']
    %18 = vsyncpa [#allocation5], 0
    %19 = vsyncpa [#allocation6], 0
    %20 = vsyncpa [#allocation9], 0
    // Predicated region
    $region2: #{tpu_custom_call.1} parent=1 // pred_check
      _
    $region3: #{tpu_custom_call.1} parent=1 // pred_check_branch
      %22 = sbr.rel (0) target = $region5
    $region4: #{tpu_custom_call.1} parent=1 // pred_region
      %s24 = ssub.s32 32, 32
      %25 = vsyncadd [#allocation5], %s24
      %s27 = sshll.u32 [#allocation4], 4
      %s28 = int_to_ptr.vmem [resolvable:$true] %s27
      %30 = dma.hbm_to_vmem [thread:$0]  %s1, 32, %s28, [#allocation5]
    $region5: #{tpu_custom_call.1} parent=1 // pred_fallthru
      _
    // Predicated region
    $region6: #{tpu_custom_call.1} parent=1 // pred_check
      _
    $region7: #{tpu_custom_call.1} parent=1 // pred_check_branch
      %32 = sbr.rel (0) target = $region9
    $region8: #{tpu_custom_call.1} parent=1 // pred_region
      _
    $region9: #{tpu_custom_call.1} parent=1 // pred_fallthru
      _
    // Predicated region
    $region10: #{tpu_custom_call.1} parent=1 // pred_check
      _
    $region11: #{tpu_custom_call.1} parent=1 // pred_check_branch
      %34 = sbr.rel (0) target = $region13
    $region12: #{tpu_custom_call.1} parent=1 // pred_region
      _
    $region13: #{tpu_custom_call.1} parent=1 // pred_fallthru
      _
    // Predicated region
    $region14: #{tpu_custom_call.1} parent=1 // pred_check
      _
    $region15: #{tpu_custom_call.1} parent=1 // pred_check_branch
      %36 = sbr.rel (0) target = $region17
    $region16: #{tpu_custom_call.1} parent=1 // pred_region
      _
    $region17: #{tpu_custom_call.1} parent=1 // pred_fallthru
      _
    // Predicated region
    $region18: #{tpu_custom_call.1} parent=1 // pred_check
      _
    $region19: #{tpu_custom_call.1} parent=1 // pred_check_branch
      %38 = sbr.rel (0) target = $region21
    $region20: #{tpu_custom_call.1} parent=1 // pred_region
      %39 = dma.done [#allocation5], 32
    $region21: #{tpu_custom_call.1} parent=1 // pred_fallthru
      _
    %v40 = vld [vmem:[#allocation4] sm:$0x3]
    %v41 = vld [vmem:[%s2] sm:$0xff]
    %v42 = vld [vmem:[%s2 + $0x8] sm:$0xff]
    %v43 = vlaneseq
    %v44 = vshrl.u32 %v43, 7
    %v45 = vadd.s32 %v44, 8
    %v46 = vlaneseq
    %v47 = vand.u32 %v46, 127
    %v48 = vand.u32 %v44, 1
    %v49 = vand.u32 %v45, 1
    %vm50 = vcmp.eq.s32.totalorder %v48, %v47
    %vm51 = vcmp.eq.s32.totalorder %v49, %v47
    %v52 = vsel %vm50, 1, 0
    %v53 = vsel %vm51, 1, 0
    %v54 = vcvt.s32.f32 %v52
    %v55 = vcvt.s32.f32 %v53
    %v56 = vand.u32 %v47, 1
    %vm57 = vcmp.eq.s32.totalorder %v56, %v44
    %v58 = vsel %vm57, 1, 0
    %v59 = vcvt.s32.f32 %v58
    %v60 = vld [vmem:[%s3 + $0xc0] sm:$0xff]
    %v61 = vld [vmem:[%s3 + $0xc8] sm:$0xff]
    %v62 = vld [vmem:[%s3 + $0xd0] sm:$0xff]
    %v63 = vld [vmem:[%s3 + $0xd8] sm:$0xff]
    %v64 = vld [vmem:[%s3 + $0x1c0] sm:$0x1]
    %v65 = vlaneseq
    %v66 = vshrl.u32 %v65, 7
    %v67 = vsub.s32 0, %v66
    %v68 = vrot.slane %v64, %v67
    %vm69 = vcmask 261120
    %v71 = vsel %vm69, %v40, 0
    %73 = vmatprep.subr.mxu0 0.0
    %74 = vmatpush1.msra.mxu0 %v60
    %75 = vmatprep.subr.mxu0 0.0
    %76 = vmatpush1.msra.mxu0 %v61
    %77 = vmatprep.subr.mxu0 0.0
    %78 = vmatpush1.msra.mxu0 %v62
    %79 = vmatprep.subr.mxu0 0.0
    %80 = vmatpush1.msra.mxu0 %v63
    %81 = vmatprep.subr.mxu0 0.0
    %82 = vmatpush1.msra.mxu0 0.0
    %83 = vmatprep.subr.mxu0 0.0
    %84 = vmatpush1.msra.mxu0 0.0
    %85 = vmatprep.subr.mxu0 0.0
    %86 = vmatpush1.msra.mxu0 0.0
    %87 = vmatprep.subr.mxu0 0.0
    %88 = vmatpush1.msra.mxu0 0.0
    %89 = vmatprep.subr.mxu0 0.0
    %90 = vmatpush1.msra.mxu0 0.0
    %91 = vmatprep.subr.mxu0 0.0
    %92 = vmatpush1.msra.mxu0 0.0
    %93 = vmatprep.subr.mxu0 0.0
    %94 = vmatpush1.msra.mxu0 0.0
    %95 = vmatprep.subr.mxu0 0.0
    %96 = vmatpush1.msra.mxu0 0.0
    %97 = vmatprep.subr.mxu0 0.0
    %98 = vmatpush1.msra.mxu0 0.0
    %99 = vmatprep.subr.mxu0 0.0
    %100 = vmatpush1.msra.mxu0 0.0
    %101 = vmatprep.subr.mxu0 0.0
    %102 = vmatpush1.msra.mxu0 0.0
    %103 = vmatprep.subr.mxu0 0.0
    %104 = vmatpush1.msra.mxu0 0.0
    %105 = vmatprep.subr.mxu0 0.0
    %106 = vmatpush1.msra.mxu0 0.0
    %107 = vmatprep.subr.mxu0 0.0
    %108 = vmatpush1.msra.mxu0 0.0
    %109 = vmatprep.subr.mxu0 0.0
    %110 = vmatpush1.msra.mxu0 0.0
    %111 = vmatprep.subr.mxu0 0.0
    %112 = vmatpush1.msra.mxu0 0.0
    %113 = vmatprep.subr.mxu0 0.0
    %114 = vmatpush1.msra.mxu0 0.0
    %115 = vmatprep.subr.mxu0 0.0
    %116 = vmatpush1.msra.mxu0 0.0
    %117 = vmatprep.subr.mxu0 0.0
    %118 = vmatpush1.msra.mxu0 0.0
    %119 = vmatprep.subr.mxu0 0.0
    %120 = vmatpush1.msra.mxu0 0.0
    %121 = vmatprep.subr.mxu0 0.0
    %122 = vmatpush1.msra.mxu0 0.0
    %123 = vmatprep.subr.mxu0 0.0
    %124 = vmatpush1.msra.mxu0 0.0
    %125 = vmatprep.subr.mxu0 0.0
    %126 = vmatpush1.msra.mxu0 0.0
    %127 = vmatprep.subr.mxu0 0.0
    %128 = vmatpush1.msra.mxu0 0.0
    %129 = vmatprep.subr.mxu0 0.0
    %130 = vmatpush1.msra.mxu0 0.0
    %131 = vmatprep.subr.mxu0 0.0
    %132 = vmatpush1.msra.mxu0 0.0
    %133 = vmatprep.subr.mxu0 0.0
    %134 = vmatpush1.msra.mxu0 0.0
    %135 = vmatprep.subr.mxu0 0.0
    %136 = vmatpush1.msra.mxu0 0.0
    %137 = vmatprep.mubr.f32.mxu0 0.0
    %138 = vmatmul.mubr.f32.gmra.mrb[0].mxu0 %v71
    %v139 = vpop.f32.mrb[0].mxu0
    %v140 = vadd.f32 %v68, %v139
    %v141 = vpop.f32.mrb[0].mxu0
    %142 = vdwg.mxu0
    %vm143 = vcmask 15360
    %v145 = vsel %vm143, %v54, 0
    %v148 = vsel %vm143, %v55, 0
    %vm150 = vcmask 1041408
    %v152 = vsel %vm150, %v140, 0
    %154 = vmatprep.subr.mxu0 0.0
    %155 = vmatpush1.msra.mxu0 %v152
    %156 = vmatprep.subr.mxu0 0.0
    %157 = vmatpush1.msra.mxu0 0.0
    %158 = vmatprep.subr.mxu0 0.0
    %159 = vmatpush1.msra.mxu0 0.0
    %160 = vmatprep.subr.mxu0 0.0
    %161 = vmatpush1.msra.mxu0 0.0
    %162 = vmatprep.subr.mxu0 0.0
    %163 = vmatpush1.msra.mxu0 0.0
    %164 = vmatprep.subr.mxu0 0.0
    %165 = vmatpush1.msra.mxu0 0.0
    %166 = vmatprep.subr.mxu0 0.0
    %167 = vmatpush1.msra.mxu0 0.0
    %168 = vmatprep.subr.mxu0 0.0
    %169 = vmatpush1.msra.mxu0 0.0
    %170 = vmatprep.subr.mxu0 0.0
    %171 = vmatpush1.msra.mxu0 0.0
    %172 = vmatprep.subr.mxu0 0.0
    %173 = vmatpush1.msra.mxu0 0.0
    %174 = vmatprep.subr.mxu0 0.0
    %175 = vmatpush1.msra.mxu0 0.0
    %176 = vmatprep.subr.mxu0 0.0
    %177 = vmatpush1.msra.mxu0 0.0
    %178 = vmatprep.subr.mxu0 0.0
    %179 = vmatpush1.msra.mxu0 0.0
    %180 = vmatprep.subr.mxu0 0.0
    %181 = vmatpush1.msra.mxu0 0.0
    %182 = vmatprep.subr.mxu0 0.0
    %183 = vmatpush1.msra.mxu0 0.0
    %184 = vmatprep.subr.mxu0 0.0
    %185 = vmatpush1.msra.mxu0 0.0
    %186 = vmatprep.subr.mxu0 0.0
    %187 = vmatpush1.msra.mxu0 0.0
    %188 = vmatprep.subr.mxu0 0.0
    %189 = vmatpush1.msra.mxu0 0.0
    %190 = vmatprep.subr.mxu0 0.0
    %191 = vmatpush1.msra.mxu0 0.0
    %192 = vmatprep.subr.mxu0 0.0
    %193 = vmatpush1.msra.mxu0 0.0
    %194 = vmatprep.subr.mxu0 0.0
    %195 = vmatpush1.msra.mxu0 0.0
    %196 = vmatprep.subr.mxu0 0.0
    %197 = vmatpush1.msra.mxu0 0.0
    %198 = vmatprep.subr.mxu0 0.0
    %199 = vmatpush1.msra.mxu0 0.0
    %200 = vmatprep.subr.mxu0 0.0
    %201 = vmatpush1.msra.mxu0 0.0
    %202 = vmatprep.subr.mxu0 0.0
    %203 = vmatpush1.msra.mxu0 0.0
    %204 = vmatprep.subr.mxu0 0.0
    %205 = vmatpush1.msra.mxu0 0.0
    %206 = vmatprep.subr.mxu0 0.0
    %207 = vmatpush1.msra.mxu0 0.0
    %208 = vmatprep.subr.mxu0 0.0
    %209 = vmatpush1.msra.mxu0 0.0
    %210 = vmatprep.subr.mxu0 0.0
    %211 = vmatpush1.msra.mxu0 0.0
    %212 = vmatprep.subr.mxu0 0.0
    %213 = vmatpush1.msra.mxu0 0.0
    %214 = vmatprep.subr.mxu0 0.0
    %215 = vmatpush1.msra.mxu0 0.0
    %216 = vmatprep.subr.mxu0 0.0
    %217 = vmatpush1.msra.mxu0 0.0
    %218 = vmatprep.mubr.f32.mxu0 0.0
    %219 = vmatmul.mubr.f32.gmra.mrb[0].mxu0 %v145
    %v220 = vpop.f32.mrb[0].mxu0
    %v221 = vadd.f32 0.0, %v220
    %v222 = vpop.f32.mrb[0].mxu0
    %223 = vmatprep.mubr.f32.mxu0 0.0
    %224 = vmatmul.mubr.f32.gmra.mrb[0].mxu0 %v148
    %v225 = vpop.f32.mrb[0].mxu0
    %v226 = vadd.f32 0.0, %v225
    %v227 = vpop.f32.mrb[0].mxu0
    %228 = vdwg.mxu0
    %v229 = vld [vmem:[%s3 + $0xe0] sm:$0xff]
    %v230 = vld [vmem:[%s3 + $0xe8] sm:$0xff]
    %v231 = vld [vmem:[%s3 + $0xf0] sm:$0xff]
    %v232 = vld [vmem:[%s3 + $0xf8] sm:$0xff]
    %v234 = vsel %vm69, %v41, 0
    %v237 = vsel %vm69, %v42, 0
    %239 = vmatprep.subr.mxu0 0.0
    %240 = vmatpush1.msra.mxu0 %v229
    %241 = vmatprep.subr.mxu0 0.0
    %242 = vmatpush1.msra.mxu0 %v230
    %243 = vmatprep.subr.mxu0 0.0
    %244 = vmatpush1.msra.mxu0 %v231
    %245 = vmatprep.subr.mxu0 0.0
    %246 = vmatpush1.msra.mxu0 %v232
    %247 = vmatprep.subr.mxu0 0.0
    %248 = vmatpush1.msra.mxu0 0.0
    %249 = vmatprep.subr.mxu0 0.0
    %250 = vmatpush1.msra.mxu0 0.0
    %251 = vmatprep.subr.mxu0 0.0
    %252 = vmatpush1.msra.mxu0 0.0
    %253 = vmatprep.subr.mxu0 0.0
    %254 = vmatpush1.msra.mxu0 0.0
    %255 = vmatprep.subr.mxu0 0.0
    %256 = vmatpush1.msra.mxu0 0.0
    %257 = vmatprep.subr.mxu0 0.0
    %258 = vmatpush1.msra.mxu0 0.0
    %259 = vmatprep.subr.mxu0 0.0
    %260 = vmatpush1.msra.mxu0 0.0
    %261 = vmatprep.subr.mxu0 0.0
    %262 = vmatpush1.msra.mxu0 0.0
    %263 = vmatprep.subr.mxu0 0.0
    %264 = vmatpush1.msra.mxu0 0.0
    %265 = vmatprep.subr.mxu0 0.0
    %266 = vmatpush1.msra.mxu0 0.0
    %267 = vmatprep.subr.mxu0 0.0
    %268 = vmatpush1.msra.mxu0 0.0
    %269 = vmatprep.subr.mxu0 0.0
    %270 = vmatpush1.msra.mxu0 0.0
    %271 = vmatprep.subr.mxu0 0.0
    %272 = vmatpush1.msra.mxu0 0.0
    %273 = vmatprep.subr.mxu0 0.0
    %274 = vmatpush1.msra.mxu0 0.0
    %275 = vmatprep.subr.mxu0 0.0
    %276 = vmatpush1.msra.mxu0 0.0
    %277 = vmatprep.subr.mxu0 0.0
    %278 = vmatpush1.msra.mxu0 0.0
    %279 = vmatprep.subr.mxu0 0.0
    %280 = vmatpush1.msra.mxu0 0.0
    %281 = vmatprep.subr.mxu0 0.0
    %282 = vmatpush1.msra.mxu0 0.0
    %283 = vmatprep.subr.mxu0 0.0
    %284 = vmatpush1.msra.mxu0 0.0
    %285 = vmatprep.subr.mxu0 0.0
    %286 = vmatpush1.msra.mxu0 0.0
    %287 = vmatprep.subr.mxu0 0.0
    %288 = vmatpush1.msra.mxu0 0.0
    %289 = vmatprep.subr.mxu0 0.0
    %290 = vmatpush1.msra.mxu0 0.0
    %291 = vmatprep.subr.mxu0 0.0
    %292 = vmatpush1.msra.mxu0 0.0
    %293 = vmatprep.subr.mxu0 0.0
    %294 = vmatpush1.msra.mxu0 0.0
    %295 = vmatprep.subr.mxu0 0.0
    %296 = vmatpush1.msra.mxu0 0.0
    %297 = vmatprep.subr.mxu0 0.0
    %298 = vmatpush1.msra.mxu0 0.0
    %299 = vmatprep.subr.mxu0 0.0
    %300 = vmatpush1.msra.mxu0 0.0
    %301 = vmatprep.subr.mxu0 0.0
    %302 = vmatpush1.msra.mxu0 0.0
    %303 = vmatprep.mubr.f32.mxu0 0.0
    %304 = vmatmul.mubr.f32.gmra.mrb[0].mxu0 %v234
    %v305 = vpop.f32.mrb[0].mxu0
    %v306 = vadd.f32 %v221, %v305
    %v307 = vpop.f32.mrb[0].mxu0
    %308 = vmatprep.mubr.f32.mxu0 0.0
    %309 = vmatmul.mubr.f32.gmra.mrb[0].mxu0 %v237
    %v310 = vpop.f32.mrb[0].mxu0
    %v311 = vadd.f32 %v226, %v310
    %v312 = vpop.f32.mrb[0].mxu0
    %313 = vdwg.mxu0
    %v314 = vmax.f32 %v306, 0.0
    %v315 = vmax.f32 %v311, 0.0
    %v316 = vld [vmem:[%s3 + $0x1c1] sm:$0x1]
    %v317 = vlaneseq
    %v318 = vshrl.u32 %v317, 7
    %v319 = vsub.s32 0, %v318
    %v320 = vrot.slane %v316, %v319
    %v321 = vmul.f32 %v314, %v320
    %v322 = vmul.f32 %v315, %v320
    %v323 = vsel %vm69, %v321, 0.0
    %324 = vadd.xlane.f32.xlu0 %v323
    %v325 = vpop.xlane.xlu0 %324
    %v326 = vsel %vm69, %v322, 0.0
    %327 = vadd.xlane.f32.xlu0 %v326
    %v328 = vpop.xlane.xlu0 %327
    %v329 = vmax.f32 %v325, %v328
    %v330 = vrot.slane %v329, 4
    %v331 = vmax.f32 %v329, %v330
    %v332 = vrot.slane %v331, 2
    %v333 = vmax.f32 %v331, %v332
    %v334 = vrot.slane %v333, 1
    %v335 = vmax.f32 %v333, %v334
    %v336 = vsub.f32 %v325, %v335
    %v337 = vsub.f32 %v328, %v335
    %v338 = vmul.f32 %v336, 1.442695
    %v339 = vpow.pop %v338
    %v340 = vmul.f32 %v337, 1.442695
    %v341 = vpow.pop %v340
    %vm342 = vcmask 130048
    %v344 = vsel %vm342, %v59, 0
    %346 = vmatprep.subr.mxu0 0.0
    %347 = vmatpush1.msra.mxu0 %v339
    %348 = vmatprep.subr.mxu0 0.0
    %349 = vmatpush1.msra.mxu0 %v341
    %350 = vmatprep.subr.mxu0 0.0
    %351 = vmatpush1.msra.mxu0 0.0
    %352 = vmatprep.subr.mxu0 0.0
    %353 = vmatpush1.msra.mxu0 0.0
    %354 = vmatprep.subr.mxu0 0.0
    %355 = vmatpush1.msra.mxu0 0.0
    %356 = vmatprep.subr.mxu0 0.0
    %357 = vmatpush1.msra.mxu0 0.0
    %358 = vmatprep.subr.mxu0 0.0
    %359 = vmatpush1.msra.mxu0 0.0
    %360 = vmatprep.subr.mxu0 0.0
    %361 = vmatpush1.msra.mxu0 0.0
    %362 = vmatprep.subr.mxu0 0.0
    %363 = vmatpush1.msra.mxu0 0.0
    %364 = vmatprep.subr.mxu0 0.0
    %365 = vmatpush1.msra.mxu0 0.0
    %366 = vmatprep.subr.mxu0 0.0
    %367 = vmatpush1.msra.mxu0 0.0
    %368 = vmatprep.subr.mxu0 0.0
    %369 = vmatpush1.msra.mxu0 0.0
    %370 = vmatprep.subr.mxu0 0.0
    %371 = vmatpush1.msra.mxu0 0.0
    %372 = vmatprep.subr.mxu0 0.0
    %373 = vmatpush1.msra.mxu0 0.0
    %374 = vmatprep.subr.mxu0 0.0
    %375 = vmatpush1.msra.mxu0 0.0
    %376 = vmatprep.subr.mxu0 0.0
    %377 = vmatpush1.msra.mxu0 0.0
    %378 = vmatprep.subr.mxu0 0.0
    %379 = vmatpush1.msra.mxu0 0.0
    %380 = vmatprep.subr.mxu0 0.0
    %381 = vmatpush1.msra.mxu0 0.0
    %382 = vmatprep.subr.mxu0 0.0
    %383 = vmatpush1.msra.mxu0 0.0
    %384 = vmatprep.subr.mxu0 0.0
    %385 = vmatpush1.msra.mxu0 0.0
    %386 = vmatprep.subr.mxu0 0.0
    %387 = vmatpush1.msra.mxu0 0.0
    %388 = vmatprep.subr.mxu0 0.0
    %389 = vmatpush1.msra.mxu0 0.0
    %390 = vmatprep.subr.mxu0 0.0
    %391 = vmatpush1.msra.mxu0 0.0
    %392 = vmatprep.subr.mxu0 0.0
    %393 = vmatpush1.msra.mxu0 0.0
    %394 = vmatprep.subr.mxu0 0.0
    %395 = vmatpush1.msra.mxu0 0.0
    %396 = vmatprep.subr.mxu0 0.0
    %397 = vmatpush1.msra.mxu0 0.0
    %398 = vmatprep.subr.mxu0 0.0
    %399 = vmatpush1.msra.mxu0 0.0
    %400 = vmatprep.subr.mxu0 0.0
    %401 = vmatpush1.msra.mxu0 0.0
    %402 = vmatprep.subr.mxu0 0.0
    %403 = vmatpush1.msra.mxu0 0.0
    %404 = vmatprep.subr.mxu0 0.0
    %405 = vmatpush1.msra.mxu0 0.0
    %406 = vmatprep.subr.mxu0 0.0
    %407 = vmatpush1.msra.mxu0 0.0
    %408 = vmatprep.subr.mxu0 0.0
    %409 = vmatpush1.msra.mxu0 0.0
    %410 = vmatprep.mubr.f32.mxu0 0.0
    %411 = vmatmul.mubr.f32.gmra.mrb[0].mxu0 %v344
    %v412 = vpop.f32.mrb[0].mxu0
    %v413 = vadd.f32 0.0, %v412
    %v414 = vpop.f32.mrb[0].mxu0
    %415 = vdwg.mxu0
    %v416 = vmul.f32 %v339, %v41
    %v417 = vmul.f32 %v341, %v42
    %418 = vmatprep.subr.mxu0 0.0
    %419 = vmatpush1.msra.mxu0 %v416
    %420 = vmatprep.subr.mxu0 0.0
    %421 = vmatpush1.msra.mxu0 %v417
    %422 = vmatprep.subr.mxu0 0.0
    %423 = vmatpush1.msra.mxu0 0.0
    %424 = vmatprep.subr.mxu0 0.0
    %425 = vmatpush1.msra.mxu0 0.0
    %426 = vmatprep.subr.mxu0 0.0
    %427 = vmatpush1.msra.mxu0 0.0
    %428 = vmatprep.subr.mxu0 0.0
    %429 = vmatpush1.msra.mxu0 0.0
    %430 = vmatprep.subr.mxu0 0.0
    %431 = vmatpush1.msra.mxu0 0.0
    %432 = vmatprep.subr.mxu0 0.0
    %433 = vmatpush1.msra.mxu0 0.0
    %434 = vmatprep.subr.mxu0 0.0
    %435 = vmatpush1.msra.mxu0 0.0
    %436 = vmatprep.subr.mxu0 0.0
    %437 = vmatpush1.msra.mxu0 0.0
    %438 = vmatprep.subr.mxu0 0.0
    %439 = vmatpush1.msra.mxu0 0.0
    %440 = vmatprep.subr.mxu0 0.0
    %441 = vmatpush1.msra.mxu0 0.0
    %442 = vmatprep.subr.mxu0 0.0
    %443 = vmatpush1.msra.mxu0 0.0
    %444 = vmatprep.subr.mxu0 0.0
    %445 = vmatpush1.msra.mxu0 0.0
    %446 = vmatprep.subr.mxu0 0.0
    %447 = vmatpush1.msra.mxu0 0.0
    %448 = vmatprep.subr.mxu0 0.0
    %449 = vmatpush1.msra.mxu0 0.0
    %450 = vmatprep.subr.mxu0 0.0
    %451 = vmatpush1.msra.mxu0 0.0
    %452 = vmatprep.subr.mxu0 0.0
    %453 = vmatpush1.msra.mxu0 0.0
    %454 = vmatprep.subr.mxu0 0.0
    %455 = vmatpush1.msra.mxu0 0.0
    %456 = vmatprep.subr.mxu0 0.0
    %457 = vmatpush1.msra.mxu0 0.0
    %458 = vmatprep.subr.mxu0 0.0
    %459 = vmatpush1.msra.mxu0 0.0
    %460 = vmatprep.subr.mxu0 0.0
    %461 = vmatpush1.msra.mxu0 0.0
    %462 = vmatprep.subr.mxu0 0.0
    %463 = vmatpush1.msra.mxu0 0.0
    %464 = vmatprep.subr.mxu0 0.0
    %465 = vmatpush1.msra.mxu0 0.0
    %466 = vmatprep.subr.mxu0 0.0
    %467 = vmatpush1.msra.mxu0 0.0
    %468 = vmatprep.subr.mxu0 0.0
    %469 = vmatpush1.msra.mxu0 0.0
    %470 = vmatprep.subr.mxu0 0.0
    %471 = vmatpush1.msra.mxu0 0.0
    %472 = vmatprep.subr.mxu0 0.0
    %473 = vmatpush1.msra.mxu0 0.0
    %474 = vmatprep.subr.mxu0 0.0
    %475 = vmatpush1.msra.mxu0 0.0
    %476 = vmatprep.subr.mxu0 0.0
    %477 = vmatpush1.msra.mxu0 0.0
    %478 = vmatprep.subr.mxu0 0.0
    %479 = vmatpush1.msra.mxu0 0.0
    %480 = vmatprep.subr.mxu0 0.0
    %481 = vmatpush1.msra.mxu0 0.0
    %482 = vmatprep.mubr.f32.mxu0 0.0
    %483 = vmatmul.mubr.f32.gmra.mrb[0].mxu0 %v344
    %v484 = vpop.f32.mrb[0].mxu0
    %v485 = vadd.f32 0.0, %v484
    %v486 = vpop.f32.mrb[0].mxu0
    %487 = vdwg.mxu0
    %v488 = vrcp.pop %v413
    %490 = vset.pattern.permute.xlu0 0
    %491 = vperm.xlu0 %490, %v488
    %v492 = vpop.permute.xlu0 %491
    %v494 = vmul.f32 %v485, %v492
    %s495 = sld [smem:[#allocation3]]
    %v496 = vstv %s495
    %vm497 = vcmp.eq.s32.totalorder %v44, 1
    %s498 = sld [smem:[#allocation3 + $0x1]]
    %v499 = vstv %s498
    %v500 = vsel %vm497, %v499, %v496
    %vm501 = vcmp.eq.s32.totalorder %v47, %v500
    %v502 = vsel %vm501, 1, 0
    %v503 = vcvt.s32.f32 %v502
    %v504 = vld [vmem:[%s3] sm:$0xff]
    %v505 = vld [vmem:[%s3 + $0x8] sm:$0xff]
    %v506 = vld [vmem:[%s3 + $0x10] sm:$0xff]
    %v507 = vld [vmem:[%s3 + $0x18] sm:$0xff]
    %v508 = vld [vmem:[%s3 + $0x20] sm:$0xff]
    %v509 = vld [vmem:[%s3 + $0x28] sm:$0xff]
    %v510 = vld [vmem:[%s3 + $0x30] sm:$0xff]
    %v511 = vld [vmem:[%s3 + $0x38] sm:$0xff]
    %v512 = vld [vmem:[%s3 + $0x100] sm:$0xff]
    %v513 = vld [vmem:[%s3 + $0x108] sm:$0xff]
    %v514 = vld [vmem:[%s3 + $0x110] sm:$0xff]
    %v515 = vld [vmem:[%s3 + $0x118] sm:$0xff]
    %v517 = vsel %vm69, %v494, 0
    %519 = vmatprep.subr.mxu0 0.0
    %520 = vmatpush1.msra.mxu0 %v512
    %521 = vmatprep.subr.mxu0 0.0
    %522 = vmatpush1.msra.mxu0 %v513
    %523 = vmatprep.subr.mxu0 0.0
    %524 = vmatpush1.msra.mxu0 %v514
    %525 = vmatprep.subr.mxu0 0.0
    %526 = vmatpush1.msra.mxu0 %v515
    %527 = vmatprep.subr.mxu0 0.0
    %528 = vmatpush1.msra.mxu0 0.0
    %529 = vmatprep.subr.mxu0 0.0
    %530 = vmatpush1.msra.mxu0 0.0
    %531 = vmatprep.subr.mxu0 0.0
    %532 = vmatpush1.msra.mxu0 0.0
    %533 = vmatprep.subr.mxu0 0.0
    %534 = vmatpush1.msra.mxu0 0.0
    %535 = vmatprep.subr.mxu0 0.0
    %536 = vmatpush1.msra.mxu0 0.0
    %537 = vmatprep.subr.mxu0 0.0
    %538 = vmatpush1.msra.mxu0 0.0
    %539 = vmatprep.subr.mxu0 0.0
    %540 = vmatpush1.msra.mxu0 0.0
    %541 = vmatprep.subr.mxu0 0.0
    %542 = vmatpush1.msra.mxu0 0.0
    %543 = vmatprep.subr.mxu0 0.0
    %544 = vmatpush1.msra.mxu0 0.0
    %545 = vmatprep.subr.mxu0 0.0
    %546 = vmatpush1.msra.mxu0 0.0
    %547 = vmatprep.subr.mxu0 0.0
    %548 = vmatpush1.msra.mxu0 0.0
    %549 = vmatprep.subr.mxu0 0.0
    %550 = vmatpush1.msra.mxu0 0.0
    %551 = vmatprep.subr.mxu0 0.0
    %552 = vmatpush1.msra.mxu0 0.0
    %553 = vmatprep.subr.mxu0 0.0
    %554 = vmatpush1.msra.mxu0 0.0
    %555 = vmatprep.subr.mxu0 0.0
    %556 = vmatpush1.msra.mxu0 0.0
    %557 = vmatprep.subr.mxu0 0.0
    %558 = vmatpush1.msra.mxu0 0.0
    %559 = vmatprep.subr.mxu0 0.0
    %560 = vmatpush1.msra.mxu0 0.0
    %561 = vmatprep.subr.mxu0 0.0
    %562 = vmatpush1.msra.mxu0 0.0
    %563 = vmatprep.subr.mxu0 0.0
    %564 = vmatpush1.msra.mxu0 0.0
    %565 = vmatprep.subr.mxu0 0.0
    %566 = vmatpush1.msra.mxu0 0.0
    %567 = vmatprep.subr.mxu0 0.0
    %568 = vmatpush1.msra.mxu0 0.0
    %569 = vmatprep.subr.mxu0 0.0
    %570 = vmatpush1.msra.mxu0 0.0
    %571 = vmatprep.subr.mxu0 0.0
    %572 = vmatpush1.msra.mxu0 0.0
    %573 = vmatprep.subr.mxu0 0.0
    %574 = vmatpush1.msra.mxu0 0.0
    %575 = vmatprep.subr.mxu0 0.0
    %576 = vmatpush1.msra.mxu0 0.0
    %577 = vmatprep.subr.mxu0 0.0
    %578 = vmatpush1.msra.mxu0 0.0
    %579 = vmatprep.subr.mxu0 0.0
    %580 = vmatpush1.msra.mxu0 0.0
    %581 = vmatprep.subr.mxu0 0.0
    %582 = vmatpush1.msra.mxu0 0.0
    %583 = vmatprep.mubr.f32.mxu0 0.0
    %584 = vmatmul.mubr.f32.gmra.mrb[0].mxu0 %v517
    %v585 = vpop.f32.mrb[0].mxu0
    %v586 = vadd.f32 0.0, %v585
    %v587 = vpop.f32.mrb[0].mxu0
    %588 = vdwg.mxu0
    %vm589 = vcmask 523264
    %v591 = vsel %vm589, %v503, 0
    %593 = vmatprep.subr.mxu0 0.0
    %594 = vmatpush1.msra.mxu0 %v504
    %595 = vmatprep.subr.mxu0 0.0
    %596 = vmatpush1.msra.mxu0 %v505
    %597 = vmatprep.subr.mxu0 0.0
    %598 = vmatpush1.msra.mxu0 %v506
    %599 = vmatprep.subr.mxu0 0.0
    %600 = vmatpush1.msra.mxu0 %v507
    %601 = vmatprep.subr.mxu0 0.0
    %602 = vmatpush1.msra.mxu0 %v508
    %603 = vmatprep.subr.mxu0 0.0
    %604 = vmatpush1.msra.mxu0 %v509
    %605 = vmatprep.subr.mxu0 0.0
    %606 = vmatpush1.msra.mxu0 %v510
    %607 = vmatprep.subr.mxu0 0.0
    %608 = vmatpush1.msra.mxu0 %v511
    %609 = vmatprep.subr.mxu0 0.0
    %610 = vmatpush1.msra.mxu0 0.0
    %611 = vmatprep.subr.mxu0 0.0
    %612 = vmatpush1.msra.mxu0 0.0
    %613 = vmatprep.subr.mxu0 0.0
    %614 = vmatpush1.msra.mxu0 0.0
    %615 = vmatprep.subr.mxu0 0.0
    %616 = vmatpush1.msra.mxu0 0.0
    %617 = vmatprep.subr.mxu0 0.0
    %618 = vmatpush1.msra.mxu0 0.0
    %619 = vmatprep.subr.mxu0 0.0
    %620 = vmatpush1.msra.mxu0 0.0
    %621 = vmatprep.subr.mxu0 0.0
    %622 = vmatpush1.msra.mxu0 0.0
    %623 = vmatprep.subr.mxu0 0.0
    %624 = vmatpush1.msra.mxu0 0.0
    %625 = vmatprep.subr.mxu0 0.0
    %626 = vmatpush1.msra.mxu0 0.0
    %627 = vmatprep.subr.mxu0 0.0
    %628 = vmatpush1.msra.mxu0 0.0
    %629 = vmatprep.subr.mxu0 0.0
    %630 = vmatpush1.msra.mxu0 0.0
    %631 = vmatprep.subr.mxu0 0.0
    %632 = vmatpush1.msra.mxu0 0.0
    %633 = vmatprep.subr.mxu0 0.0
    %634 = vmatpush1.msra.mxu0 0.0
    %635 = vmatprep.subr.mxu0 0.0
    %636 = vmatpush1.msra.mxu0 0.0
    %637 = vmatprep.subr.mxu0 0.0
    %638 = vmatpush1.msra.mxu0 0.0
    %639 = vmatprep.subr.mxu0 0.0
    %640 = vmatpush1.msra.mxu0 0.0
    %641 = vmatprep.subr.mxu0 0.0
    %642 = vmatpush1.msra.mxu0 0.0
    %643 = vmatprep.subr.mxu0 0.0
    %644 = vmatpush1.msra.mxu0 0.0
    %645 = vmatprep.subr.mxu0 0.0
    %646 = vmatpush1.msra.mxu0 0.0
    %647 = vmatprep.subr.mxu0 0.0
    %648 = vmatpush1.msra.mxu0 0.0
    %649 = vmatprep.subr.mxu0 0.0
    %650 = vmatpush1.msra.mxu0 0.0
    %651 = vmatprep.subr.mxu0 0.0
    %652 = vmatpush1.msra.mxu0 0.0
    %653 = vmatprep.subr.mxu0 0.0
    %654 = vmatpush1.msra.mxu0 0.0
    %655 = vmatprep.subr.mxu0 0.0
    %656 = vmatpush1.msra.mxu0 0.0
    %657 = vmatprep.mubr.f32.mxu0 0.0
    %658 = vmatmul.mubr.f32.gmra.mrb[0].mxu0 %v591
    %v659 = vpop.f32.mrb[0].mxu0
    %v660 = vadd.f32 %v586, %v659
    %v661 = vpop.f32.mrb[0].mxu0
    %662 = vdwg.mxu0
    %v663 = vld [vmem:[%s3 + $0x160] sm:$0xff]
    %v664 = vld [vmem:[%s3 + $0x168] sm:$0xff]
    %v665 = vld [vmem:[%s3 + $0x170] sm:$0xff]
    %v666 = vld [vmem:[%s3 + $0x178] sm:$0xff]
    %v667 = vld [vmem:[%s3 + $0x1c2] sm:$0x1]
    %v668 = vlaneseq
    %v669 = vshrl.u32 %v668, 7
    %v670 = vsub.s32 0, %v669
    %v671 = vrot.slane %v667, %v670
    %672 = vmatprep.subr.mxu0 0.0
    %673 = vmatpush1.msra.mxu0 %v663
    %674 = vmatprep.subr.mxu0 0.0
    %675 = vmatpush1.msra.mxu0 %v664
    %676 = vmatprep.subr.mxu0 0.0
    %677 = vmatpush1.msra.mxu0 %v665
    %678 = vmatprep.subr.mxu0 0.0
    %679 = vmatpush1.msra.mxu0 %v666
    %680 = vmatprep.subr.mxu0 0.0
    %681 = vmatpush1.msra.mxu0 0.0
    %682 = vmatprep.subr.mxu0 0.0
    %683 = vmatpush1.msra.mxu0 0.0
    %684 = vmatprep.subr.mxu0 0.0
    %685 = vmatpush1.msra.mxu0 0.0
    %686 = vmatprep.subr.mxu0 0.0
    %687 = vmatpush1.msra.mxu0 0.0
    %688 = vmatprep.subr.mxu0 0.0
    %689 = vmatpush1.msra.mxu0 0.0
    %690 = vmatprep.subr.mxu0 0.0
    %691 = vmatpush1.msra.mxu0 0.0
    %692 = vmatprep.subr.mxu0 0.0
    %693 = vmatpush1.msra.mxu0 0.0
    %694 = vmatprep.subr.mxu0 0.0
    %695 = vmatpush1.msra.mxu0 0.0
    %696 = vmatprep.subr.mxu0 0.0
    %697 = vmatpush1.msra.mxu0 0.0
    %698 = vmatprep.subr.mxu0 0.0
    %699 = vmatpush1.msra.mxu0 0.0
    %700 = vmatprep.subr.mxu0 0.0
    %701 = vmatpush1.msra.mxu0 0.0
    %702 = vmatprep.subr.mxu0 0.0
    %703 = vmatpush1.msra.mxu0 0.0
    %704 = vmatprep.subr.mxu0 0.0
    %705 = vmatpush1.msra.mxu0 0.0
    %706 = vmatprep.subr.mxu0 0.0
    %707 = vmatpush1.msra.mxu0 0.0
    %708 = vmatprep.subr.mxu0 0.0
    %709 = vmatpush1.msra.mxu0 0.0
    %710 = vmatprep.subr.mxu0 0.0
    %711 = vmatpush1.msra.mxu0 0.0
    %712 = vmatprep.subr.mxu0 0.0
    %713 = vmatpush1.msra.mxu0 0.0
    %714 = vmatprep.subr.mxu0 0.0
    %715 = vmatpush1.msra.mxu0 0.0
    %716 = vmatprep.subr.mxu0 0.0
    %717 = vmatpush1.msra.mxu0 0.0
    %718 = vmatprep.subr.mxu0 0.0
    %719 = vmatpush1.msra.mxu0 0.0
    %720 = vmatprep.subr.mxu0 0.0
    %721 = vmatpush1.msra.mxu0 0.0
    %722 = vmatprep.subr.mxu0 0.0
    %723 = vmatpush1.msra.mxu0 0.0
    %724 = vmatprep.subr.mxu0 0.0
    %725 = vmatpush1.msra.mxu0 0.0
    %726 = vmatprep.subr.mxu0 0.0
    %727 = vmatpush1.msra.mxu0 0.0
    %728 = vmatprep.subr.mxu0 0.0
    %729 = vmatpush1.msra.mxu0 0.0
    %730 = vmatprep.subr.mxu0 0.0
    %731 = vmatpush1.msra.mxu0 0.0
    %732 = vmatprep.subr.mxu0 0.0
    %733 = vmatpush1.msra.mxu0 0.0
    %734 = vmatprep.subr.mxu0 0.0
    %735 = vmatpush1.msra.mxu0 0.0
    %736 = vmatprep.mubr.f32.mxu0 0.0
    %737 = vmatmul.mubr.f32.gmra.mrb[0].mxu0 %v71
    %v738 = vpop.f32.mrb[0].mxu0
    %v739 = vadd.f32 %v671, %v738
    %v740 = vpop.f32.mrb[0].mxu0
    %741 = vdwg.mxu0
    %v742 = vld [vmem:[%s3 + $0x40] sm:$0xff]
    %v743 = vld [vmem:[%s3 + $0x48] sm:$0xff]
    %v744 = vld [vmem:[%s3 + $0x50] sm:$0xff]
    %v745 = vld [vmem:[%s3 + $0x58] sm:$0xff]
    %v746 = vld [vmem:[%s3 + $0x60] sm:$0xff]
    %v747 = vld [vmem:[%s3 + $0x68] sm:$0xff]
    %v748 = vld [vmem:[%s3 + $0x70] sm:$0xff]
    %v749 = vld [vmem:[%s3 + $0x78] sm:$0xff]
    %v750 = vld [vmem:[%s3 + $0x120] sm:$0xff]
    %v751 = vld [vmem:[%s3 + $0x128] sm:$0xff]
    %v752 = vld [vmem:[%s3 + $0x130] sm:$0xff]
    %v753 = vld [vmem:[%s3 + $0x138] sm:$0xff]
    %754 = vmatprep.subr.mxu0 0.0
    %755 = vmatpush1.msra.mxu0 %v750
    %756 = vmatprep.subr.mxu0 0.0
    %757 = vmatpush1.msra.mxu0 %v751
    %758 = vmatprep.subr.mxu0 0.0
    %759 = vmatpush1.msra.mxu0 %v752
    %760 = vmatprep.subr.mxu0 0.0
    %761 = vmatpush1.msra.mxu0 %v753
    %762 = vmatprep.subr.mxu0 0.0
    %763 = vmatpush1.msra.mxu0 0.0
    %764 = vmatprep.subr.mxu0 0.0
    %765 = vmatpush1.msra.mxu0 0.0
    %766 = vmatprep.subr.mxu0 0.0
    %767 = vmatpush1.msra.mxu0 0.0
    %768 = vmatprep.subr.mxu0 0.0
    %769 = vmatpush1.msra.mxu0 0.0
    %770 = vmatprep.subr.mxu0 0.0
    %771 = vmatpush1.msra.mxu0 0.0
    %772 = vmatprep.subr.mxu0 0.0
    %773 = vmatpush1.msra.mxu0 0.0
    %774 = vmatprep.subr.mxu0 0.0
    %775 = vmatpush1.msra.mxu0 0.0
    %776 = vmatprep.subr.mxu0 0.0
    %777 = vmatpush1.msra.mxu0 0.0
    %778 = vmatprep.subr.mxu0 0.0
    %779 = vmatpush1.msra.mxu0 0.0
    %780 = vmatprep.subr.mxu0 0.0
    %781 = vmatpush1.msra.mxu0 0.0
    %782 = vmatprep.subr.mxu0 0.0
    %783 = vmatpush1.msra.mxu0 0.0
    %784 = vmatprep.subr.mxu0 0.0
    %785 = vmatpush1.msra.mxu0 0.0
    %786 = vmatprep.subr.mxu0 0.0
    %787 = vmatpush1.msra.mxu0 0.0
    %788 = vmatprep.subr.mxu0 0.0
    %789 = vmatpush1.msra.mxu0 0.0
    %790 = vmatprep.subr.mxu0 0.0
    %791 = vmatpush1.msra.mxu0 0.0
    %792 = vmatprep.subr.mxu0 0.0
    %793 = vmatpush1.msra.mxu0 0.0
    %794 = vmatprep.subr.mxu0 0.0
    %795 = vmatpush1.msra.mxu0 0.0
    %796 = vmatprep.subr.mxu0 0.0
    %797 = vmatpush1.msra.mxu0 0.0
    %798 = vmatprep.subr.mxu0 0.0
    %799 = vmatpush1.msra.mxu0 0.0
    %800 = vmatprep.subr.mxu0 0.0
    %801 = vmatpush1.msra.mxu0 0.0
    %802 = vmatprep.subr.mxu0 0.0
    %803 = vmatpush1.msra.mxu0 0.0
    %804 = vmatprep.subr.mxu0 0.0
    %805 = vmatpush1.msra.mxu0 0.0
    %806 = vmatprep.subr.mxu0 0.0
    %807 = vmatpush1.msra.mxu0 0.0
    %808 = vmatprep.subr.mxu0 0.0
    %809 = vmatpush1.msra.mxu0 0.0
    %810 = vmatprep.subr.mxu0 0.0
    %811 = vmatpush1.msra.mxu0 0.0
    %812 = vmatprep.subr.mxu0 0.0
    %813 = vmatpush1.msra.mxu0 0.0
    %814 = vmatprep.subr.mxu0 0.0
    %815 = vmatpush1.msra.mxu0 0.0
    %816 = vmatprep.subr.mxu0 0.0
    %817 = vmatpush1.msra.mxu0 0.0
    %818 = vmatprep.mubr.f32.mxu0 0.0
    %819 = vmatmul.mubr.f32.gmra.mrb[0].mxu0 %v517
    %v820 = vpop.f32.mrb[0].mxu0
    %v821 = vadd.f32 0.0, %v820
    %v822 = vpop.f32.mrb[0].mxu0
    %823 = vdwg.mxu0
    %824 = vmatprep.subr.mxu0 0.0
    %825 = vmatpush1.msra.mxu0 %v742
    %826 = vmatprep.subr.mxu0 0.0
    %827 = vmatpush1.msra.mxu0 %v743
    %828 = vmatprep.subr.mxu0 0.0
    %829 = vmatpush1.msra.mxu0 %v744
    %830 = vmatprep.subr.mxu0 0.0
    %831 = vmatpush1.msra.mxu0 %v745
    %832 = vmatprep.subr.mxu0 0.0
    %833 = vmatpush1.msra.mxu0 %v746
    %834 = vmatprep.subr.mxu0 0.0
    %835 = vmatpush1.msra.mxu0 %v747
    %836 = vmatprep.subr.mxu0 0.0
    %837 = vmatpush1.msra.mxu0 %v748
    %838 = vmatprep.subr.mxu0 0.0
    %839 = vmatpush1.msra.mxu0 %v749
    %840 = vmatprep.subr.mxu0 0.0
    %841 = vmatpush1.msra.mxu0 0.0
    %842 = vmatprep.subr.mxu0 0.0
    %843 = vmatpush1.msra.mxu0 0.0
    %844 = vmatprep.subr.mxu0 0.0
    %845 = vmatpush1.msra.mxu0 0.0
    %846 = vmatprep.subr.mxu0 0.0
    %847 = vmatpush1.msra.mxu0 0.0
    %848 = vmatprep.subr.mxu0 0.0
    %849 = vmatpush1.msra.mxu0 0.0
    %850 = vmatprep.subr.mxu0 0.0
    %851 = vmatpush1.msra.mxu0 0.0
    %852 = vmatprep.subr.mxu0 0.0
    %853 = vmatpush1.msra.mxu0 0.0
    %854 = vmatprep.subr.mxu0 0.0
    %855 = vmatpush1.msra.mxu0 0.0
    %856 = vmatprep.subr.mxu0 0.0
    %857 = vmatpush1.msra.mxu0 0.0
    %858 = vmatprep.subr.mxu0 0.0
    %859 = vmatpush1.msra.mxu0 0.0
    %860 = vmatprep.subr.mxu0 0.0
    %861 = vmatpush1.msra.mxu0 0.0
    %862 = vmatprep.subr.mxu0 0.0
    %863 = vmatpush1.msra.mxu0 0.0
    %864 = vmatprep.subr.mxu0 0.0
    %865 = vmatpush1.msra.mxu0 0.0
    %866 = vmatprep.subr.mxu0 0.0
    %867 = vmatpush1.msra.mxu0 0.0
    %868 = vmatprep.subr.mxu0 0.0
    %869 = vmatpush1.msra.mxu0 0.0
    %870 = vmatprep.subr.mxu0 0.0
    %871 = vmatpush1.msra.mxu0 0.0
    %872 = vmatprep.subr.mxu0 0.0
    %873 = vmatpush1.msra.mxu0 0.0
    %874 = vmatprep.subr.mxu0 0.0
    %875 = vmatpush1.msra.mxu0 0.0
    %876 = vmatprep.subr.mxu0 0.0
    %877 = vmatpush1.msra.mxu0 0.0
    %878 = vmatprep.subr.mxu0 0.0
    %879 = vmatpush1.msra.mxu0 0.0
    %880 = vmatprep.subr.mxu0 0.0
    %881 = vmatpush1.msra.mxu0 0.0
    %882 = vmatprep.subr.mxu0 0.0
    %883 = vmatpush1.msra.mxu0 0.0
    %884 = vmatprep.subr.mxu0 0.0
    %885 = vmatpush1.msra.mxu0 0.0
    %886 = vmatprep.subr.mxu0 0.0
    %887 = vmatpush1.msra.mxu0 0.0
    %888 = vmatprep.mubr.f32.mxu0 0.0
    %889 = vmatmul.mubr.f32.gmra.mrb[0].mxu0 %v591
    %v890 = vpop.f32.mrb[0].mxu0
    %v891 = vadd.f32 %v821, %v890
    %v892 = vpop.f32.mrb[0].mxu0
    %893 = vdwg.mxu0
    %v894 = vld [vmem:[%s3 + $0x180] sm:$0xff]
    %v895 = vld [vmem:[%s3 + $0x188] sm:$0xff]
    %v896 = vld [vmem:[%s3 + $0x190] sm:$0xff]
    %v897 = vld [vmem:[%s3 + $0x198] sm:$0xff]
    %v898 = vld [vmem:[%s3 + $0x1c3] sm:$0x1]
    %v899 = vlaneseq
    %v900 = vshrl.u32 %v899, 7
    %v901 = vsub.s32 0, %v900
    %v902 = vrot.slane %v898, %v901
    %903 = vmatprep.subr.mxu0 0.0
    %904 = vmatpush1.msra.mxu0 %v894
    %905 = vmatprep.subr.mxu0 0.0
    %906 = vmatpush1.msra.mxu0 %v895
    %907 = vmatprep.subr.mxu0 0.0
    %908 = vmatpush1.msra.mxu0 %v896
    %909 = vmatprep.subr.mxu0 0.0
    %910 = vmatpush1.msra.mxu0 %v897
    %911 = vmatprep.subr.mxu0 0.0
    %912 = vmatpush1.msra.mxu0 0.0
    %913 = vmatprep.subr.mxu0 0.0
    %914 = vmatpush1.msra.mxu0 0.0
    %915 = vmatprep.subr.mxu0 0.0
    %916 = vmatpush1.msra.mxu0 0.0
    %917 = vmatprep.subr.mxu0 0.0
    %918 = vmatpush1.msra.mxu0 0.0
    %919 = vmatprep.subr.mxu0 0.0
    %920 = vmatpush1.msra.mxu0 0.0
    %921 = vmatprep.subr.mxu0 0.0
    %922 = vmatpush1.msra.mxu0 0.0
    %923 = vmatprep.subr.mxu0 0.0
    %924 = vmatpush1.msra.mxu0 0.0
    %925 = vmatprep.subr.mxu0 0.0
    %926 = vmatpush1.msra.mxu0 0.0
    %927 = vmatprep.subr.mxu0 0.0
    %928 = vmatpush1.msra.mxu0 0.0
    %929 = vmatprep.subr.mxu0 0.0
    %930 = vmatpush1.msra.mxu0 0.0
    %931 = vmatprep.subr.mxu0 0.0
    %932 = vmatpush1.msra.mxu0 0.0
    %933 = vmatprep.subr.mxu0 0.0
    %934 = vmatpush1.msra.mxu0 0.0
    %935 = vmatprep.subr.mxu0 0.0
    %936 = vmatpush1.msra.mxu0 0.0
    %937 = vmatprep.subr.mxu0 0.0
    %938 = vmatpush1.msra.mxu0 0.0
    %939 = vmatprep.subr.mxu0 0.0
    %940 = vmatpush1.msra.mxu0 0.0
    %941 = vmatprep.subr.mxu0 0.0
    %942 = vmatpush1.msra.mxu0 0.0
    %943 = vmatprep.subr.mxu0 0.0
    %944 = vmatpush1.msra.mxu0 0.0
    %945 = vmatprep.subr.mxu0 0.0
    %946 = vmatpush1.msra.mxu0 0.0
    %947 = vmatprep.subr.mxu0 0.0
    %948 = vmatpush1.msra.mxu0 0.0
    %949 = vmatprep.subr.mxu0 0.0
    %950 = vmatpush1.msra.mxu0 0.0
    %951 = vmatprep.subr.mxu0 0.0
    %952 = vmatpush1.msra.mxu0 0.0
    %953 = vmatprep.subr.mxu0 0.0
    %954 = vmatpush1.msra.mxu0 0.0
    %955 = vmatprep.subr.mxu0 0.0
    %956 = vmatpush1.msra.mxu0 0.0
    %957 = vmatprep.subr.mxu0 0.0
    %958 = vmatpush1.msra.mxu0 0.0
    %959 = vmatprep.subr.mxu0 0.0
    %960 = vmatpush1.msra.mxu0 0.0
    %961 = vmatprep.subr.mxu0 0.0
    %962 = vmatpush1.msra.mxu0 0.0
    %963 = vmatprep.subr.mxu0 0.0
    %964 = vmatpush1.msra.mxu0 0.0
    %965 = vmatprep.subr.mxu0 0.0
    %966 = vmatpush1.msra.mxu0 0.0
    %967 = vmatprep.mubr.f32.mxu0 0.0
    %968 = vmatmul.mubr.f32.gmra.mrb[0].mxu0 %v71
    %v969 = vpop.f32.mrb[0].mxu0
    %v970 = vadd.f32 %v902, %v969
    %v971 = vpop.f32.mrb[0].mxu0
    %972 = vdwg.mxu0
    %v973 = vld [vmem:[%s3 + $0x80] sm:$0xff]
    %v974 = vld [vmem:[%s3 + $0x88] sm:$0xff]
    %v975 = vld [vmem:[%s3 + $0x90] sm:$0xff]
    %v976 = vld [vmem:[%s3 + $0x98] sm:$0xff]
    %v977 = vld [vmem:[%s3 + $0xa0] sm:$0xff]
    %v978 = vld [vmem:[%s3 + $0xa8] sm:$0xff]
    %v979 = vld [vmem:[%s3 + $0xb0] sm:$0xff]
    %v980 = vld [vmem:[%s3 + $0xb8] sm:$0xff]
    %v981 = vld [vmem:[%s3 + $0x140] sm:$0xff]
    %v982 = vld [vmem:[%s3 + $0x148] sm:$0xff]
    %v983 = vld [vmem:[%s3 + $0x150] sm:$0xff]
    %v984 = vld [vmem:[%s3 + $0x158] sm:$0xff]
    %985 = vmatprep.subr.mxu0 0.0
    %986 = vmatpush1.msra.mxu0 %v981
    %987 = vmatprep.subr.mxu0 0.0
    %988 = vmatpush1.msra.mxu0 %v982
    %989 = vmatprep.subr.mxu0 0.0
    %990 = vmatpush1.msra.mxu0 %v983
    %991 = vmatprep.subr.mxu0 0.0
    %992 = vmatpush1.msra.mxu0 %v984
    %993 = vmatprep.subr.mxu0 0.0
    %994 = vmatpush1.msra.mxu0 0.0
    %995 = vmatprep.subr.mxu0 0.0
    %996 = vmatpush1.msra.mxu0 0.0
    %997 = vmatprep.subr.mxu0 0.0
    %998 = vmatpush1.msra.mxu0 0.0
    %999 = vmatprep.subr.mxu0 0.0
    %1000 = vmatpush1.msra.mxu0 0.0
    %1001 = vmatprep.subr.mxu0 0.0
    %1002 = vmatpush1.msra.mxu0 0.0
    %1003 = vmatprep.subr.mxu0 0.0
    %1004 = vmatpush1.msra.mxu0 0.0
    %1005 = vmatprep.subr.mxu0 0.0
    %1006 = vmatpush1.msra.mxu0 0.0
    %1007 = vmatprep.subr.mxu0 0.0
    %1008 = vmatpush1.msra.mxu0 0.0
    %1009 = vmatprep.subr.mxu0 0.0
    %1010 = vmatpush1.msra.mxu0 0.0
    %1011 = vmatprep.subr.mxu0 0.0
    %1012 = vmatpush1.msra.mxu0 0.0
    %1013 = vmatprep.subr.mxu0 0.0
    %1014 = vmatpush1.msra.mxu0 0.0
    %1015 = vmatprep.subr.mxu0 0.0
    %1016 = vmatpush1.msra.mxu0 0.0
    %1017 = vmatprep.subr.mxu0 0.0
    %1018 = vmatpush1.msra.mxu0 0.0
    %1019 = vmatprep.subr.mxu0 0.0
    %1020 = vmatpush1.msra.mxu0 0.0
    %1021 = vmatprep.subr.mxu0 0.0
    %1022 = vmatpush1.msra.mxu0 0.0
    %1023 = vmatprep.subr.mxu0 0.0
    %1024 = vmatpush1.msra.mxu0 0.0
    %1025 = vmatprep.subr.mxu0 0.0
    %1026 = vmatpush1.msra.mxu0 0.0
    %1027 = vmatprep.subr.mxu0 0.0
    %1028 = vmatpush1.msra.mxu0 0.0
    %1029 = vmatprep.subr.mxu0 0.0
    %1030 = vmatpush1.msra.mxu0 0.0
    %1031 = vmatprep.subr.mxu0 0.0
    %1032 = vmatpush1.msra.mxu0 0.0
    %1033 = vmatprep.subr.mxu0 0.0
    %1034 = vmatpush1.msra.mxu0 0.0
    %1035 = vmatprep.subr.mxu0 0.0
    %1036 = vmatpush1.msra.mxu0 0.0
    %1037 = vmatprep.subr.mxu0 0.0
    %1038 = vmatpush1.msra.mxu0 0.0
    %1039 = vmatprep.subr.mxu0 0.0
    %1040 = vmatpush1.msra.mxu0 0.0
    %1041 = vmatprep.subr.mxu0 0.0
    %1042 = vmatpush1.msra.mxu0 0.0
    %1043 = vmatprep.subr.mxu0 0.0
    %1044 = vmatpush1.msra.mxu0 0.0
    %1045 = vmatprep.subr.mxu0 0.0
    %1046 = vmatpush1.msra.mxu0 0.0
    %1047 = vmatprep.subr.mxu0 0.0
    %1048 = vmatpush1.msra.mxu0 0.0
    %1049 = vmatprep.mubr.f32.mxu0 0.0
    %1050 = vmatmul.mubr.f32.gmra.mrb[0].mxu0 %v517
    %v1051 = vpop.f32.mrb[0].mxu0
    %v1052 = vadd.f32 0.0, %v1051
    %v1053 = vpop.f32.mrb[0].mxu0
    %1054 = vdwg.mxu0
    %1055 = vmatprep.subr.mxu0 0.0
    %1056 = vmatpush1.msra.mxu0 %v973
    %1057 = vmatprep.subr.mxu0 0.0
    %1058 = vmatpush1.msra.mxu0 %v974
    %1059 = vmatprep.subr.mxu0 0.0
    %1060 = vmatpush1.msra.mxu0 %v975
    %1061 = vmatprep.subr.mxu0 0.0
    %1062 = vmatpush1.msra.mxu0 %v976
    %1063 = vmatprep.subr.mxu0 0.0
    %1064 = vmatpush1.msra.mxu0 %v977
    %1065 = vmatprep.subr.mxu0 0.0
    %1066 = vmatpush1.msra.mxu0 %v978
    %1067 = vmatprep.subr.mxu0 0.0
    %1068 = vmatpush1.msra.mxu0 %v979
    %1069 = vmatprep.subr.mxu0 0.0
    %1070 = vmatpush1.msra.mxu0 %v980
    %1071 = vmatprep.subr.mxu0 0.0
    %1072 = vmatpush1.msra.mxu0 0.0
    %1073 = vmatprep.subr.mxu0 0.0
    %1074 = vmatpush1.msra.mxu0 0.0
    %1075 = vmatprep.subr.mxu0 0.0
    %1076 = vmatpush1.msra.mxu0 0.0
    %1077 = vmatprep.subr.mxu0 0.0
    %1078 = vmatpush1.msra.mxu0 0.0
    %1079 = vmatprep.subr.mxu0 0.0
    %1080 = vmatpush1.msra.mxu0 0.0
    %1081 = vmatprep.subr.mxu0 0.0
    %1082 = vmatpush1.msra.mxu0 0.0
    %1083 = vmatprep.subr.mxu0 0.0
    %1084 = vmatpush1.msra.mxu0 0.0
    %1085 = vmatprep.subr.mxu0 0.0
    %1086 = vmatpush1.msra.mxu0 0.0
    %1087 = vmatprep.subr.mxu0 0.0
    %1088 = vmatpush1.msra.mxu0 0.0
    %1089 = vmatprep.subr.mxu0 0.0
    %1090 = vmatpush1.msra.mxu0 0.0
    %1091 = vmatprep.subr.mxu0 0.0
    %1092 = vmatpush1.msra.mxu0 0.0
    %1093 = vmatprep.subr.mxu0 0.0
    %1094 = vmatpush1.msra.mxu0 0.0
    %1095 = vmatprep.subr.mxu0 0.0
    %1096 = vmatpush1.msra.mxu0 0.0
    %1097 = vmatprep.subr.mxu0 0.0
    %1098 = vmatpush1.msra.mxu0 0.0
    %1099 = vmatprep.subr.mxu0 0.0
    %1100 = vmatpush1.msra.mxu0 0.0
    %1101 = vmatprep.subr.mxu0 0.0
    %1102 = vmatpush1.msra.mxu0 0.0
    %1103 = vmatprep.subr.mxu0 0.0
    %1104 = vmatpush1.msra.mxu0 0.0
    %1105 = vmatprep.subr.mxu0 0.0
    %1106 = vmatpush1.msra.mxu0 0.0
    %1107 = vmatprep.subr.mxu0 0.0
    %1108 = vmatpush1.msra.mxu0 0.0
    %1109 = vmatprep.subr.mxu0 0.0
    %1110 = vmatpush1.msra.mxu0 0.0
    %1111 = vmatprep.subr.mxu0 0.0
    %1112 = vmatpush1.msra.mxu0 0.0
    %1113 = vmatprep.subr.mxu0 0.0
    %1114 = vmatpush1.msra.mxu0 0.0
    %1115 = vmatprep.subr.mxu0 0.0
    %1116 = vmatpush1.msra.mxu0 0.0
    %1117 = vmatprep.subr.mxu0 0.0
    %1118 = vmatpush1.msra.mxu0 0.0
    %1119 = vmatprep.mubr.f32.mxu0 0.0
    %1120 = vmatmul.mubr.f32.gmra.mrb[0].mxu0 %v591
    %v1121 = vpop.f32.mrb[0].mxu0
    %v1122 = vadd.f32 %v1052, %v1121
    %v1123 = vpop.f32.mrb[0].mxu0
    %1124 = vdwg.mxu0
    %v1125 = vld [vmem:[%s3 + $0x1a0] sm:$0xff]
    %v1126 = vld [vmem:[%s3 + $0x1a8] sm:$0xff]
    %v1127 = vld [vmem:[%s3 + $0x1b0] sm:$0xff]
    %v1128 = vld [vmem:[%s3 + $0x1b8] sm:$0xff]
    %v1129 = vld [vmem:[%s3 + $0x1c4] sm:$0x1]
    %v1130 = vlaneseq
    %v1131 = vshrl.u32 %v1130, 7
    %v1132 = vsub.s32 0, %v1131
    %v1133 = vrot.slane %v1129, %v1132
    %1134 = vmatprep.subr.mxu0 0.0
    %1135 = vmatpush1.msra.mxu0 %v1125
    %1136 = vmatprep.subr.mxu0 0.0
    %1137 = vmatpush1.msra.mxu0 %v1126
    %1138 = vmatprep.subr.mxu0 0.0
    %1139 = vmatpush1.msra.mxu0 %v1127
    %1140 = vmatprep.subr.mxu0 0.0
    %1141 = vmatpush1.msra.mxu0 %v1128
    %1142 = vmatprep.subr.mxu0 0.0
    %1143 = vmatpush1.msra.mxu0 0.0
    %1144 = vmatprep.subr.mxu0 0.0
    %1145 = vmatpush1.msra.mxu0 0.0
    %1146 = vmatprep.subr.mxu0 0.0
    %1147 = vmatpush1.msra.mxu0 0.0
    %1148 = vmatprep.subr.mxu0 0.0
    %1149 = vmatpush1.msra.mxu0 0.0
    %1150 = vmatprep.subr.mxu0 0.0
    %1151 = vmatpush1.msra.mxu0 0.0
    %1152 = vmatprep.subr.mxu0 0.0
    %1153 = vmatpush1.msra.mxu0 0.0
    %1154 = vmatprep.subr.mxu0 0.0
    %1155 = vmatpush1.msra.mxu0 0.0
    %1156 = vmatprep.subr.mxu0 0.0
    %1157 = vmatpush1.msra.mxu0 0.0
    %1158 = vmatprep.subr.mxu0 0.0
    %1159 = vmatpush1.msra.mxu0 0.0
    %1160 = vmatprep.subr.mxu0 0.0
    %1161 = vmatpush1.msra.mxu0 0.0
    %1162 = vmatprep.subr.mxu0 0.0
    %1163 = vmatpush1.msra.mxu0 0.0
    %1164 = vmatprep.subr.mxu0 0.0
    %1165 = vmatpush1.msra.mxu0 0.0
    %1166 = vmatprep.subr.mxu0 0.0
    %1167 = vmatpush1.msra.mxu0 0.0
    %1168 = vmatprep.subr.mxu0 0.0
    %1169 = vmatpush1.msra.mxu0 0.0
    %1170 = vmatprep.subr.mxu0 0.0
    %1171 = vmatpush1.msra.mxu0 0.0
    %1172 = vmatprep.subr.mxu0 0.0
    %1173 = vmatpush1.msra.mxu0 0.0
    %1174 = vmatprep.subr.mxu0 0.0
    %1175 = vmatpush1.msra.mxu0 0.0
    %1176 = vmatprep.subr.mxu0 0.0
    %1177 = vmatpush1.msra.mxu0 0.0
    %1178 = vmatprep.subr.mxu0 0.0
    %1179 = vmatpush1.msra.mxu0 0.0
    %1180 = vmatprep.subr.mxu0 0.0
    %1181 = vmatpush1.msra.mxu0 0.0
    %1182 = vmatprep.subr.mxu0 0.0
    %1183 = vmatpush1.msra.mxu0 0.0
    %1184 = vmatprep.subr.mxu0 0.0
    %1185 = vmatpush1.msra.mxu0 0.0
    %1186 = vmatprep.subr.mxu0 0.0
    %1187 = vmatpush1.msra.mxu0 0.0
    %1188 = vmatprep.subr.mxu0 0.0
    %1189 = vmatpush1.msra.mxu0 0.0
    %1190 = vmatprep.subr.mxu0 0.0
    %1191 = vmatpush1.msra.mxu0 0.0
    %1192 = vmatprep.subr.mxu0 0.0
    %1193 = vmatpush1.msra.mxu0 0.0
    %1194 = vmatprep.subr.mxu0 0.0
    %1195 = vmatpush1.msra.mxu0 0.0
    %1196 = vmatprep.subr.mxu0 0.0
    %1197 = vmatpush1.msra.mxu0 0.0
    %1198 = vmatprep.mubr.f32.mxu0 0.0
    %1199 = vmatmul.mubr.f32.gmra.mrb[0].mxu0 %v71
    %v1200 = vpop.f32.mrb[0].mxu0
    %v1201 = vadd.f32 %v1133, %v1200
    %v1202 = vpop.f32.mrb[0].mxu0
    %1203 = vdwg.mxu0
    %v1204 = vadd.f32 %v660, %v739
    %v1205 = vxor.u32 %v1204, 2147483648
    %v1206 = vmul.f32 %v1205, 1.442695
    %v1207 = vpow.pop %v1206
    %v1208 = vadd.f32 %v1207, 1.0
    %v1209 = vrcp.pop %v1208
    %v1210 = vmul.f32 1.0, %v1209
    %v1211 = vadd.f32 %v891, %v970
    %v1212 = vxor.u32 %v1211, 2147483648
    %v1213 = vmul.f32 %v1212, 1.442695
    %v1214 = vpow.pop %v1213
    %v1215 = vadd.f32 %v1214, 1.0
    %v1216 = vrcp.pop %v1215
    %v1217 = vmul.f32 1.0, %v1216
    %v1218 = vmul.f32 %v1210, %v1201
    %v1219 = vadd.f32 %v1122, %v1218
    %v1220 = vtanh.pop %v1219
    %v1221 = vsub.f32 1.0, %v1217
    %v1222 = vmul.f32 %v1221, %v1220
    %v1223 = vmul.f32 %v1217, %v40
    %v1224 = vadd.f32 %v1222, %v1223
    %v1225 = vld [vmem:[%s4] sm:$0xff]
    %v1226 = vld [vmem:[%s4 + $0x8] sm:$0xff]
    %v1227 = vld [vmem:[%s4 + $0x10] sm:$0xff]
    %v1228 = vld [vmem:[%s4 + $0x18] sm:$0xff]
    %v1229 = vld [vmem:[%s4 + $0x20] sm:$0xff]
    %v1230 = vld [vmem:[%s4 + $0x28] sm:$0xff]
    %v1231 = vld [vmem:[%s4 + $0x30] sm:$0xff]
    %v1232 = vld [vmem:[%s4 + $0x38] sm:$0xff]
    %1233 = vmatprep.subr.mxu0 0.0
    %1234 = vmatpush1.msra.mxu0 %v1229
    %1235 = vmatprep.subr.mxu0 0.0
    %1236 = vmatpush1.msra.mxu0 %v1230
    %1237 = vmatprep.subr.mxu0 0.0
    %1238 = vmatpush1.msra.mxu0 %v1231
    %1239 = vmatprep.subr.mxu0 0.0
    %1240 = vmatpush1.msra.mxu0 %v1232
    %1241 = vmatprep.subr.mxu0 0.0
    %1242 = vmatpush1.msra.mxu0 0.0
    %1243 = vmatprep.subr.mxu0 0.0
    %1244 = vmatpush1.msra.mxu0 0.0
    %1245 = vmatprep.subr.mxu0 0.0
    %1246 = vmatpush1.msra.mxu0 0.0
    %1247 = vmatprep.subr.mxu0 0.0
    %1248 = vmatpush1.msra.mxu0 0.0
    %1249 = vmatprep.subr.mxu0 0.0
    %1250 = vmatpush1.msra.mxu0 0.0
    %1251 = vmatprep.subr.mxu0 0.0
    %1252 = vmatpush1.msra.mxu0 0.0
    %1253 = vmatprep.subr.mxu0 0.0
    %1254 = vmatpush1.msra.mxu0 0.0
    %1255 = vmatprep.subr.mxu0 0.0
    %1256 = vmatpush1.msra.mxu0 0.0
    %1257 = vmatprep.subr.mxu0 0.0
    %1258 = vmatpush1.msra.mxu0 0.0
    %1259 = vmatprep.subr.mxu0 0.0
    %1260 = vmatpush1.msra.mxu0 0.0
    %1261 = vmatprep.subr.mxu0 0.0
    %1262 = vmatpush1.msra.mxu0 0.0
    %1263 = vmatprep.subr.mxu0 0.0
    %1264 = vmatpush1.msra.mxu0 0.0
    %1265 = vmatprep.subr.mxu0 0.0
    %1266 = vmatpush1.msra.mxu0 0.0
    %1267 = vmatprep.subr.mxu0 0.0
    %1268 = vmatpush1.msra.mxu0 0.0
    %1269 = vmatprep.subr.mxu0 0.0
    %1270 = vmatpush1.msra.mxu0 0.0
    %1271 = vmatprep.subr.mxu0 0.0
    %1272 = vmatpush1.msra.mxu0 0.0
    %1273 = vmatprep.subr.mxu0 0.0
    %1274 = vmatpush1.msra.mxu0 0.0
    %1275 = vmatprep.subr.mxu0 0.0
    %1276 = vmatpush1.msra.mxu0 0.0
    %1277 = vmatprep.subr.mxu0 0.0
    %1278 = vmatpush1.msra.mxu0 0.0
    %1279 = vmatprep.subr.mxu0 0.0
    %1280 = vmatpush1.msra.mxu0 0.0
    %1281 = vmatprep.subr.mxu0 0.0
    %1282 = vmatpush1.msra.mxu0 0.0
    %1283 = vmatprep.subr.mxu0 0.0
    %1284 = vmatpush1.msra.mxu0 0.0
    %1285 = vmatprep.subr.mxu0 0.0
    %1286 = vmatpush1.msra.mxu0 0.0
    %1287 = vmatprep.subr.mxu0 0.0
    %1288 = vmatpush1.msra.mxu0 0.0
    %1289 = vmatprep.subr.mxu0 0.0
    %1290 = vmatpush1.msra.mxu0 0.0
    %1291 = vmatprep.subr.mxu0 0.0
    %1292 = vmatpush1.msra.mxu0 0.0
    %1293 = vmatprep.subr.mxu0 0.0
    %1294 = vmatpush1.msra.mxu0 0.0
    %1295 = vmatprep.subr.mxu0 0.0
    %1296 = vmatpush1.msra.mxu0 0.0
    %1297 = vmatprep.mubr.f32.mxu0 0.0
    %1298 = vmatmul.mubr.f32.gmra.mrb[0].mxu0 %v517
    %v1299 = vpop.f32.mrb[0].mxu0
    %v1300 = vadd.f32 0.0, %v1299
    %v1301 = vpop.f32.mrb[0].mxu0
    %1302 = vdwg.mxu0
    %v1304 = vsel %vm69, %v1224, 0
    %1306 = vmatprep.subr.mxu0 0.0
    %1307 = vmatpush1.msra.mxu0 %v1225
    %1308 = vmatprep.subr.mxu0 0.0
    %1309 = vmatpush1.msra.mxu0 %v1226
    %1310 = vmatprep.subr.mxu0 0.0
    %1311 = vmatpush1.msra.mxu0 %v1227
    %1312 = vmatprep.subr.mxu0 0.0
    %1313 = vmatpush1.msra.mxu0 %v1228
    %1314 = vmatprep.subr.mxu0 0.0
    %1315 = vmatpush1.msra.mxu0 0.0
    %1316 = vmatprep.subr.mxu0 0.0
    %1317 = vmatpush1.msra.mxu0 0.0
    %1318 = vmatprep.subr.mxu0 0.0
    %1319 = vmatpush1.msra.mxu0 0.0
    %1320 = vmatprep.subr.mxu0 0.0
    %1321 = vmatpush1.msra.mxu0 0.0
    %1322 = vmatprep.subr.mxu0 0.0
    %1323 = vmatpush1.msra.mxu0 0.0
    %1324 = vmatprep.subr.mxu0 0.0
    %1325 = vmatpush1.msra.mxu0 0.0
    %1326 = vmatprep.subr.mxu0 0.0
    %1327 = vmatpush1.msra.mxu0 0.0
    %1328 = vmatprep.subr.mxu0 0.0
    %1329 = vmatpush1.msra.mxu0 0.0
    %1330 = vmatprep.subr.mxu0 0.0
    %1331 = vmatpush1.msra.mxu0 0.0
    %1332 = vmatprep.subr.mxu0 0.0
    %1333 = vmatpush1.msra.mxu0 0.0
    %1334 = vmatprep.subr.mxu0 0.0
    %1335 = vmatpush1.msra.mxu0 0.0
    %1336 = vmatprep.subr.mxu0 0.0
    %1337 = vmatpush1.msra.mxu0 0.0
    %1338 = vmatprep.subr.mxu0 0.0
    %1339 = vmatpush1.msra.mxu0 0.0
    %1340 = vmatprep.subr.mxu0 0.0
    %1341 = vmatpush1.msra.mxu0 0.0
    %1342 = vmatprep.subr.mxu0 0.0
    %1343 = vmatpush1.msra.mxu0 0.0
    %1344 = vmatprep.subr.mxu0 0.0
    %1345 = vmatpush1.msra.mxu0 0.0
    %1346 = vmatprep.subr.mxu0 0.0
    %1347 = vmatpush1.msra.mxu0 0.0
    %1348 = vmatprep.subr.mxu0 0.0
    %1349 = vmatpush1.msra.mxu0 0.0
    %1350 = vmatprep.subr.mxu0 0.0
    %1351 = vmatpush1.msra.mxu0 0.0
    %1352 = vmatprep.subr.mxu0 0.0
    %1353 = vmatpush1.msra.mxu0 0.0
    %1354 = vmatprep.subr.mxu0 0.0
    %1355 = vmatpush1.msra.mxu0 0.0
    %1356 = vmatprep.subr.mxu0 0.0
    %1357 = vmatpush1.msra.mxu0 0.0
    %1358 = vmatprep.subr.mxu0 0.0
    %1359 = vmatpush1.msra.mxu0 0.0
    %1360 = vmatprep.subr.mxu0 0.0
    %1361 = vmatpush1.msra.mxu0 0.0
    %1362 = vmatprep.subr.mxu0 0.0
    %1363 = vmatpush1.msra.mxu0 0.0
    %1364 = vmatprep.subr.mxu0 0.0
    %1365 = vmatpush1.msra.mxu0 0.0
    %1366 = vmatprep.subr.mxu0 0.0
    %1367 = vmatpush1.msra.mxu0 0.0
    %1368 = vmatprep.subr.mxu0 0.0
    %1369 = vmatpush1.msra.mxu0 0.0
    %1370 = vmatprep.mubr.f32.mxu0 0.0
    %1371 = vmatmul.mubr.f32.gmra.mrb[0].mxu0 %v1304
    %v1372 = vpop.f32.mrb[0].mxu0
    %v1373 = vadd.f32 %v1300, %v1372
    %v1374 = vpop.f32.mrb[0].mxu0
    %1375 = vdwg.mxu0
    %v1376 = vld [vmem:[%s4 + $0x40] sm:$0x1]
    %v1377 = vlaneseq
    %v1378 = vshrl.u32 %v1377, 7
    %v1379 = vsub.s32 0, %v1378
    %v1380 = vrot.slane %v1376, %v1379
    %v1381 = vadd.f32 %v1373, %v1380
    %v1382 = vsel %vm150, %v1381, -inf
    %1383 = vmax.xlane.f32.xlu0 %v1382
    %v1384 = vpop.xlane.xlu0 %1383
    %v1385 = vsub.f32 %v1381, %v1384
    %v1386 = vmul.f32 %v1385, 1.442695
    %v1387 = vpow.pop %v1386
    %v1388 = vsel %vm150, %v1387, 0.0
    %1389 = vadd.xlane.f32.xlu0 %v1388
    %v1390 = vpop.xlane.xlu0 %1389
    %v1391 = vrcp.pop %v1390
    %v1392 = vmul.f32 %v1387, %v1391
    %v1393 = vadd.f32 %v1392, 1e-12
    %v1394 = vlog2.pop %v1393
    %v1395 = vmul.f32 %v1394, 0.6931472
    %1396 = vst [vmem:[#allocation7] sm:$0x3] %v1395
    %vm1397 = vcmask 254976
    %1398 = vst.msk [vmem:[#allocation8] sm:$0x3] %vm1397, %v1224
    // Predicated region
    $region22: #{tpu_custom_call.1} parent=1 // pred_check
      _
    $region23: #{tpu_custom_call.1} parent=1 // pred_check_branch
      %1400 = sbr.rel (0) target = $region25
    $region24: #{tpu_custom_call.1} parent=1 // pred_region
      %s1402 = ssub.s32 32, 32
      %1403 = vsyncadd [#allocation6], %s1402
      %s1405 = sshll.u32 [#allocation7], 4
      %s1406 = int_to_ptr.vmem [resolvable:$true] %s1405
      %1408 = dma.vmem_to_hbm [thread:$0]  %s1406, 32, %s5, [#allocation6]
    $region25: #{tpu_custom_call.1} parent=1 // pred_fallthru
      _
    // Predicated region
    $region26: #{tpu_custom_call.1} parent=1 // pred_check
      _
    $region27: #{tpu_custom_call.1} parent=1 // pred_check_branch
      %1410 = sbr.rel (0) target = $region29
    $region28: #{tpu_custom_call.1} parent=1 // pred_region
      %s1412 = ssub.s32 32, 32
      %1413 = vsyncadd [#allocation9], %s1412
      %s1415 = sshll.u32 [#allocation8], 4
      %s1416 = int_to_ptr.vmem [resolvable:$true] %s1415
      %1418 = dma.vmem_to_hbm [thread:$0]  %s1416, 32, %s6, [#allocation9]
    $region29: #{tpu_custom_call.1} parent=1 // pred_fallthru
      _
    // Predicated region
    $region30: #{tpu_custom_call.1} parent=1 // pred_check
      _
    $region31: #{tpu_custom_call.1} parent=1 // pred_check_branch
      %1420 = sbr.rel (0) target = $region33
    $region32: #{tpu_custom_call.1} parent=1 // pred_region
      %1421 = dma.done [#allocation6], 32
    $region33: #{tpu_custom_call.1} parent=1 // pred_fallthru
      _
    // Predicated region
    $region34: #{tpu_custom_call.1} parent=1 // pred_check
      _
    $region35: #{tpu_custom_call.1} parent=1 // pred_check_branch
      %1423 = sbr.rel (0) target = $region37
    $region36: #{tpu_custom_call.1} parent=1 // pred_region
      %1424 = dma.done [#allocation9], 32
    $region37: #{tpu_custom_call.1} parent=1 // pred_fallthru
      _
    %1425 = vsyncpa [#allocation5], 1
    %1426 = vsyncpa [#allocation6], 1
    %1427 = vsyncpa [#allocation9], 1

</llo_original>
